<compile_context>
chip_gen: v5e
topology: v5e:2x2
jax: 0.10.0
libtpu: 0.0.40
codegen_flags: <defaults>
</compile_context>

<pallas_src>
import functools

import jax
import jax.numpy as jnp
import numpy as np
from jax.experimental import pallas as pl
from jax.experimental.pallas import tpu as pltpu

# ---- small synthetic config (consistent with RecformerConfig fields) ----
PAD_TOKEN_ID = 1          # config.pad_token_id (Longformer/RoBERTa default)
VOCAB_SIZE = 256          # config.vocab_size
HIDDEN = 128              # config.hidden_size
MAX_POS = 128             # config.max_position_embeddings
TOKEN_TYPE_SIZE = 4       # config.token_type_size
MAX_ITEM_EMB = 32         # config.max_item_embeddings
LN_EPS = 1e-12            # config.layer_norm_eps
BATCH = 4
SEQ_LEN = 64
TOKEN_TILE = 128          # TM: tokens per grid step (use 256 on v6e/v7x at scale)


def _embeddings_kernel(ids_ref, table_ref, gamma_ref, beta_ref, out_ref, *,
                       n_pad, eps):
    ids = ids_ref[...]                   # (TM, 4) int32, offsets pre-applied
    tm = ids.shape[0]
    n_streams = ids.shape[1]
    h = out_ref.shape[-1]

    # --- fused gather: one lane-dense multi-hot @ concatenated table ---
    # The four id ranges are disjoint after offsetting, so boolean OR is
    # exactly equivalent to summing four one-hot matrices.
    lane = jax.lax.broadcasted_iota(jnp.int32, (tm, n_pad), 1)
    hit = lane == ids[:, 0:1]
    for c in range(1, n_streams):
        hit = hit | (lane == ids[:, c:c + 1])
    mh = hit.astype(jnp.float32)                                     # (TM, n_pad)
    emb = jnp.dot(mh, table_ref[...],
                  preferred_element_type=jnp.float32)                # (TM, H)

    # --- LayerNorm (centered form; d is reused for the output) ---
    inv_h = 1.0 / h
    mean = jnp.sum(emb, axis=-1, keepdims=True) * inv_h
    d = emb - mean
    var = jnp.sum(d * d, axis=-1, keepdims=True) * inv_h
    scale = gamma_ref[...] * jax.lax.rsqrt(var + eps)                # (1/TM, H)

    # Dropout: eval-mode identity (nn.Dropout is a no-op at inference).
    out_ref[...] = d * scale + beta_ref[...]


def recformer_embeddings(input_ids, token_type_ids, item_position_ids,
                         word_tab, pos_tab, tt_tab, item_tab, gamma, beta,
                         *, tm=TOKEN_TILE):
    B, L = input_ids.shape
    H = word_tab.shape[1]
    n_word, n_pos = word_tab.shape[0], pos_tab.shape[0]
    n_tt, n_item = tt_tab.shape[0], item_tab.shape[0]
    n_total = n_word + n_pos + n_tt + n_item
    n_pad = ((n_total + 127) // 128) * 128

    n_tok = B * L
    tm = min(tm, n_tok)
    assert n_tok % tm == 0, "token count must divide the token tile"
    # Position ids must stay inside the position-embedding segment.
    assert L + PAD_TOKEN_ID < n_pos, "seq_len too large for max_position_embeddings"

    # --- wrapper-side plumbing (cheap XLA work, keeps the kernel lane-dense) --
    # create_position_ids_from_input_ids: cumsum of the non-pad mask.
    mask = (input_ids != PAD_TOKEN_ID).astype(jnp.int32)
    pos_ids = jnp.cumsum(mask, axis=1) * mask + PAD_TOKEN_ID

    # One packed (B*L, 4) id stream with table offsets already folded in.
    ids_packed = jnp.stack(
        [input_ids.reshape(-1),
         pos_ids.reshape(-1) + n_word,
         token_type_ids.reshape(-1) + n_word + n_pos,
         item_position_ids.reshape(-1) + n_word + n_pos + n_tt],
        axis=-1).astype(jnp.int32)                                   # (B*L, 4)

    # Row-concatenated table, padded to a multiple of 128 rows.
    table = jnp.concatenate(
        [word_tab, pos_tab, tt_tab, item_tab,
         jnp.zeros((n_pad - n_total, H), word_tab.dtype)], axis=0)
    gamma2 = gamma.reshape(1, H)
    beta2 = beta.reshape(1, H)

    kernel = functools.partial(_embeddings_kernel, n_pad=n_pad, eps=LN_EPS)

    out_flat = pl.pallas_call(
        kernel,
        out_shape=jax.ShapeDtypeStruct((n_tok, H), jnp.float32),
        grid_spec=pltpu.PrefetchScalarGridSpec(
            num_scalar_prefetch=0,
            grid=(n_tok // tm,),                 # tiled over tokens
            in_specs=[
                pl.BlockSpec((tm, 4), lambda t: (t, 0)),             # packed ids
                pl.BlockSpec((n_pad, H), lambda t: (0, 0),           # fused table
                             pipeline_mode=pl.Buffered(1)),
                pl.BlockSpec((1, H), lambda t: (0, 0),               # LN gamma
                             pipeline_mode=pl.Buffered(1)),
                pl.BlockSpec((1, H), lambda t: (0, 0),               # LN beta
                             pipeline_mode=pl.Buffered(1)),
            ],
            out_specs=pl.BlockSpec((tm, H), lambda t: (t, 0)),
        ),
        compiler_params=pltpu.CompilerParams(
            dimension_semantics=("parallel",)),
    )(ids_packed, table, gamma2, beta2)
    return out_flat.reshape(B, L, H)


def _reference(input_ids, token_type_ids, item_position_ids,
               word_tab, pos_tab, tt_tab, item_tab, gamma, beta):
    """Pure-JAX reference mirroring the PyTorch forward."""
    mask = (input_ids != PAD_TOKEN_ID).astype(jnp.int32)
    pos_ids = jnp.cumsum(mask, axis=1) * mask + PAD_TOKEN_ID
    emb = (word_tab[input_ids] + pos_tab[pos_ids]
           + tt_tab[token_type_ids] + item_tab[item_position_ids])
    mean = jnp.mean(emb, axis=-1, keepdims=True)
    var = jnp.mean((emb - mean) ** 2, axis=-1, keepdims=True)
    return (emb - mean) * jax.lax.rsqrt(var + LN_EPS) * gamma.reshape(1, 1, -1) \
        + beta.reshape(1, 1, -1)


if __name__ == "__main__":
    key = jax.random.PRNGKey(0)
    k_w, k_p, k_t, k_i, k_ids, k_tt, k_item = jax.random.split(key, 7)

    # Deterministic parameter init (nn.Embedding ~ N(0, 0.02^2) style,
    # padding_idx rows zeroed as PyTorch does at init).
    word_tab = 0.02 * jax.random.normal(k_w, (VOCAB_SIZE, HIDDEN), jnp.float32)
    word_tab = word_tab.at[PAD_TOKEN_ID].set(0.0)
    pos_tab = 0.02 * jax.random.normal(k_p, (MAX_POS, HIDDEN), jnp.float32)
    pos_tab = pos_tab.at[PAD_TOKEN_ID].set(0.0)
    tt_tab = 0.02 * jax.random.normal(k_t, (TOKEN_TYPE_SIZE, HIDDEN), jnp.float32)
    item_tab = 0.02 * jax.random.normal(k_i, (MAX_ITEM_EMB, HIDDEN), jnp.float32)
    gamma = jnp.ones((1, HIDDEN), jnp.float32)
    beta = jnp.zeros((1, HIDDEN), jnp.float32)

    # Deterministic inputs; include trailing padding tokens per batch row.
    input_ids = jax.random.randint(k_ids, (BATCH, SEQ_LEN), 2, VOCAB_SIZE,
                                   dtype=jnp.int32)
    pad_tail = jnp.arange(SEQ_LEN) >= (SEQ_LEN - 5)
    input_ids = jnp.where(pad_tail[None, :], PAD_TOKEN_ID, input_ids)
    token_type_ids = jax.random.randint(k_tt, (BATCH, SEQ_LEN), 0,
                                        TOKEN_TYPE_SIZE, dtype=jnp.int32)
    item_position_ids = jax.random.randint(k_item, (BATCH, SEQ_LEN), 0,
                                           MAX_ITEM_EMB, dtype=jnp.int32)

    out = recformer_embeddings(input_ids, token_type_ids, item_position_ids,
                               word_tab, pos_tab, tt_tab, item_tab, gamma, beta)
    out = jax.block_until_ready(out)

    ref = _reference(input_ids, token_type_ids, item_position_ids,
                     word_tab, pos_tab, tt_tab, item_tab, gamma, beta)
    np.testing.assert_allclose(np.asarray(out), np.asarray(ref),
                               rtol=1e-4, atol=1e-4)
    print("KERNEL_OK")
</pallas_src>

<mosaic_0001>
module attributes {stable_mosaic.version = 11 : i64} {
  func.func @_embeddings_kernel(%arg0: i32, %arg1: memref<128x4xi32, #tpu.memory_space<vmem>>, %arg2: memref<512x128xf32, #tpu.memory_space<vmem>>, %arg3: memref<1x128xf32, #tpu.memory_space<vmem>>, %arg4: memref<1x128xf32, #tpu.memory_space<vmem>>, %arg5: memref<128x128xf32, #tpu.memory_space<vmem>>) attributes {dimension_semantics = [#tpu.dimension_semantics<parallel>], iteration_bounds = array<i64: 2>, scalar_prefetch = 0 : i64, scratch_operands = 0 : i64, tpu.core_type = #tpu.core_type<tc>, window_params = [{transform_indices = @transform_0, window_bounds = array<i64: 128, 4>}, {pipeline_mode = #tpu.pipeline_mode<synchronous>, transform_indices = @transform_1, window_bounds = array<i64: 512, 128>}, {pipeline_mode = #tpu.pipeline_mode<synchronous>, transform_indices = @transform_2, window_bounds = array<i64: 1, 128>}, {pipeline_mode = #tpu.pipeline_mode<synchronous>, transform_indices = @transform_3, window_bounds = array<i64: 1, 128>}, {transform_indices = @transform_4, window_bounds = array<i64: 128, 128>}]} {
    %c0 = arith.constant 0 : index
    %c0_0 = arith.constant 0 : index
    %0 = vector.load %arg1[%c0, %c0_0] : memref<128x4xi32, #tpu.memory_space<vmem>>, vector<128x4xi32>
    %1 = tpu.iota {dimensions = array<i32: 1>} : vector<128x512xi32>
    %2 = vector.extract_strided_slice %0 {offsets = [0, 0], sizes = [128, 1], strides = [1, 1]} : vector<128x4xi32> to vector<128x1xi32>
    %3 = vector.broadcast %2 : vector<128x1xi32> to vector<128x512xi32>
    %4 = arith.cmpi eq, %1, %3 : vector<128x512xi32>
    %5 = vector.extract_strided_slice %0 {offsets = [0, 1], sizes = [128, 1], strides = [1, 1]} : vector<128x4xi32> to vector<128x1xi32>
    %6 = vector.broadcast %5 : vector<128x1xi32> to vector<128x512xi32>
    %7 = arith.cmpi eq, %1, %6 : vector<128x512xi32>
    %8 = arith.ori %4, %7 : vector<128x512xi1>
    %9 = vector.extract_strided_slice %0 {offsets = [0, 2], sizes = [128, 1], strides = [1, 1]} : vector<128x4xi32> to vector<128x1xi32>
    %10 = vector.broadcast %9 : vector<128x1xi32> to vector<128x512xi32>
    %11 = arith.cmpi eq, %1, %10 : vector<128x512xi32>
    %12 = arith.ori %8, %11 : vector<128x512xi1>
    %13 = vector.extract_strided_slice %0 {offsets = [0, 3], sizes = [128, 1], strides = [1, 1]} : vector<128x4xi32> to vector<128x1xi32>
    %14 = vector.broadcast %13 : vector<128x1xi32> to vector<128x512xi32>
    %15 = arith.cmpi eq, %1, %14 : vector<128x512xi32>
    %16 = arith.ori %12, %15 : vector<128x512xi1>
    %17 = arith.extui %16 : vector<128x512xi1> to vector<128x512xi32>
    %18 = arith.sitofp %17 : vector<128x512xi32> to vector<128x512xf32>
    %c0_1 = arith.constant 0 : index
    %c0_2 = arith.constant 0 : index
    %19 = vector.load %arg2[%c0_1, %c0_2] : memref<512x128xf32, #tpu.memory_space<vmem>>, vector<512x128xf32>
    %cst = arith.constant dense<0.000000e+00> : vector<128x128xf32>
    %20 = tpu.matmul %18, %19, %cst {dimension_numbers = #tpu.dot_dimension_numbers<[1], [0], [0], [1], [0, 0, 1, 1], [], []>} : vector<128x512xf32>, vector<512x128xf32>, vector<128x128xf32> -> vector<128x128xf32>
    %cst_3 = arith.constant dense<0.000000e+00> : vector<128xf32>
    %21 = vector.multi_reduction <add>, %20, %cst_3 [1] : vector<128x128xf32> to vector<128xf32>
    %22 = vector.shape_cast %21 : vector<128xf32> to vector<128x1xf32>
    %cst_4 = arith.constant 7.812500e-03 : f32
    %23 = vector.broadcast %cst_4 : f32 to vector<128x1xf32>
    %24 = arith.mulf %22, %23 : vector<128x1xf32>
    %25 = vector.broadcast %24 : vector<128x1xf32> to vector<128x128xf32>
    %26 = arith.subf %20, %25 : vector<128x128xf32>
    %27 = arith.mulf %26, %26 : vector<128x128xf32>
    %cst_5 = arith.constant dense<0.000000e+00> : vector<128xf32>
    %28 = vector.multi_reduction <add>, %27, %cst_5 [1] : vector<128x128xf32> to vector<128xf32>
    %29 = vector.shape_cast %28 : vector<128xf32> to vector<128x1xf32>
    %cst_6 = arith.constant 7.812500e-03 : f32
    %30 = vector.broadcast %cst_6 : f32 to vector<128x1xf32>
    %31 = arith.mulf %29, %30 : vector<128x1xf32>
    %c0_7 = arith.constant 0 : index
    %c0_8 = arith.constant 0 : index
    %32 = vector.load %arg3[%c0_7, %c0_8] : memref<1x128xf32, #tpu.memory_space<vmem>>, vector<1x128xf32>
    %cst_9 = arith.constant 9.99999996E-13 : f32
    %33 = vector.broadcast %cst_9 : f32 to vector<128x1xf32>
    %34 = arith.addf %31, %33 : vector<128x1xf32>
    %35 = math.rsqrt %34 : vector<128x1xf32>
    %36 = vector.broadcast %32 : vector<1x128xf32> to vector<128x128xf32>
    %37 = vector.broadcast %35 : vector<128x1xf32> to vector<128x128xf32>
    %38 = arith.mulf %36, %37 : vector<128x128xf32>
    %39 = arith.mulf %26, %38 : vector<128x128xf32>
    %c0_10 = arith.constant 0 : index
    %c0_11 = arith.constant 0 : index
    %40 = vector.load %arg4[%c0_10, %c0_11] : memref<1x128xf32, #tpu.memory_space<vmem>>, vector<1x128xf32>
    %41 = vector.broadcast %40 : vector<1x128xf32> to vector<128x128xf32>
    %42 = arith.addf %39, %41 : vector<128x128xf32>
    %c0_12 = arith.constant 0 : index
    %c0_13 = arith.constant 0 : index
    %43 = vector.load %arg5[%c0_12, %c0_13] : memref<128x128xf32, #tpu.memory_space<vmem>>, vector<128x128xf32>
    tpu.vector_store %arg5[%c0_12, %c0_13], %42 {strides = array<i32>} : memref<128x128xf32, #tpu.memory_space<vmem>>, vector<128x128xf32>,
    return
  }
  func.func @transform_0(%arg0: i32) -> (i32, i32) {
    %c0_i32 = arith.constant 0 : i32
    %c0_i32_0 = arith.constant 0 : i32
    return %arg0, %c0_i32 : i32, i32
  }
  func.func @transform_1(%arg0: i32) -> (i32, i32) {
    %c0_i32 = arith.constant 0 : i32
    %c0_i32_0 = arith.constant 0 : i32
    %c0_i32_1 = arith.constant 0 : i32
    return %c0_i32, %c0_i32_0 : i32, i32
  }
  func.func @transform_2(%arg0: i32) -> (i32, i32) {
    %c0_i32 = arith.constant 0 : i32
    %c0_i32_0 = arith.constant 0 : i32
    %c0_i32_1 = arith.constant 0 : i32
    return %c0_i32, %c0_i32_0 : i32, i32
  }
  func.func @transform_3(%arg0: i32) -> (i32, i32) {
    %c0_i32 = arith.constant 0 : i32
    %c0_i32_0 = arith.constant 0 : i32
    %c0_i32_1 = arith.constant 0 : i32
    return %c0_i32, %c0_i32_0 : i32, i32
  }
  func.func @transform_4(%arg0: i32) -> (i32, i32) {
    %c0_i32 = arith.constant 0 : i32
    %c0_i32_0 = arith.constant 0 : i32
    return %arg0, %c0_i32 : i32, i32
  }
}

</mosaic_0001>

<llo_original>
// kernel: tpu_custom_call.1
$region0: #{tpu_custom_call.1}
  #allocation0 [shape = 'u32[]', space=smem, size = 0x4, offset = 0x4, fixed_abs, tag = 'smem constant byte address 0x4 - core index']
  #allocation1 [shape = 'u32[72,128]{1,0:T(1,128)}', space=vmem, size = 0x9000, scoped, tag = 'internal scratch']
  %s0 = inlined_call_operand.vmem [shape: s32[256,4], index: 0, kind: input, shape index: {}]
  %s1 = inlined_call_operand.hbm [shape: f32[512,128], index: 1, kind: input, shape index: {}]
  %s2 = inlined_call_operand.vmem [shape: f32[1,128], index: 2, kind: input, shape index: {}]
  %s3 = inlined_call_operand.vmem [shape: f32[1,128], index: 3, kind: input, shape index: {}]
  %s4 = inlined_call_operand.hbm [shape: f32[256,128], index: 4, kind: output, shape index: {}]
  %s5 = sld [smem:[#allocation0]]
  $region53: #{tpu_custom_call.1} parent=0
    _
  %s7 = ssub.s32 1, %s5
  %s8 = scalar_select 0, %s7, %s5
  $region1: #{tpu_custom_call.1} parent=0
    #allocation2 [shape = 'u8[262144]{0}', space=vmem, size = 0x40000, scoped, tag = 'input window, operand 1, single buffered']
    #allocation3 [shape = 's32[2]{0}', space=sflag, size = 0x8, scoped, tag = 'scoped memory for tpu_custom_call.1']
    #allocation4 [shape = 's32[2]{0}', space=sflag, size = 0x8, scoped, tag = 'scoped memory for tpu_custom_call.1']
    #allocation5 [shape = 'u8[131072]{0}', space=vmem, size = 0x20000, scoped, tag = 'output window, operand 0']
    %9 = vsyncpa [#allocation3], 0
    %10 = vsyncpa [#allocation4], 0
    %s11 = scalar_lea.sflag [#allocation4], 1
    %12 = vsyncpa %s11, 0
    loop: start=0, step=1, limit=4
    $region2: #{tpu_custom_call.1} parent=1 // loop_pre_header
      _
    $region3: #{tpu_custom_call.1} parent=1 // loop_header
      %s14 = sphi 0, %s18
      %p15 = scmp.ge.s32.totalorder %s14, 4
      %s24 = sphi 0, %s26
      %s27 = sphi 0, %s24
      %s28 = sphi 0, %s27
      %s44 = sphi 0, %s28
      %s48 = sphi 0, %s48
      %s50 = sphi 0, %s48
      %s51 = sphi 0, %s50
      %s65 = sphi 0, %s51
      %s69 = sphi 0, %s69
      %s71 = sphi 0, %s69
      %s72 = sphi 0, %s71
      %s86 = sphi 0, %s72
      %s90 = sphi 0, %s90
      %s92 = sphi 0, %s90
      %s93 = sphi 0, %s92
      %s107 = sphi 0, %s93
      %s113 = sphi 0, %s115
      %s116 = sphi 0, %s113
      %s117 = sphi 0, %s116
      %s133 = sphi 0, %s117
    $region4: #{tpu_custom_call.1} parent=1 // loop_header_branch
      %17 = sbr.rel (%p15) target = $region8
    $region5: #{tpu_custom_call.1} parent=1 // loop_body
      %s19 = ssub.s32 %s14, 1
      %s20 = ssub.s32 %s14, 2
      %s21 = sadd.s32 %s14, 1
      %s22 = ssub.s32 %s14, %s21
      %p23 = scmp.eq.s32.totalorder %s22, 0
      %s25 = sadd.s32 %s24, 1
      %s26 = scalar_select %p23, %s24, %s25
      %p29 = pneg %p23
      %p30 = scmp.eq.s32.totalorder %s14, 1
      %p31 = por %p29, %p30
      %p32 = scmp.ne.s32.totalorder %s24, %s27
      %p33 = scmp.eq.s32.totalorder %s14, 0
      %p34 = por %p32, %p33
      %p35 = scmp.ne.s32.totalorder %s24, %s27
      %p36 = scmp.eq.s32.totalorder %s19, 1
      %p37 = por %p35, %p36
      %p38 = scmp.ne.s32.totalorder %s27, %s28
      %p39 = scmp.eq.s32.totalorder %s19, 0
      %p40 = por %p38, %p39
      %p41 = scmp.ne.s32.totalorder %s27, %s28
      %p42 = scmp.eq.s32.totalorder %s20, 1
      %p43 = por %p41, %p42
      %p45 = scmp.ne.s32.totalorder %s28, %s44
      %p46 = scmp.eq.s32.totalorder %s20, 0
      %p47 = por %p45, %p46
      %s49 = sadd.s32 %s48, 1
      %p52 = scmp.eq.s32.totalorder %s14, 1
      %p53 = scmp.ne.s32.totalorder %s48, %s50
      %p54 = scmp.eq.s32.totalorder %s14, 0
      %p55 = por %p53, %p54
      %p56 = scmp.ne.s32.totalorder %s48, %s50
      %p57 = scmp.eq.s32.totalorder %s19, 1
      %p58 = por %p56, %p57
      %p59 = scmp.ne.s32.totalorder %s50, %s51
      %p60 = scmp.eq.s32.totalorder %s19, 0
      %p61 = por %p59, %p60
      %p62 = scmp.ne.s32.totalorder %s50, %s51
      %p63 = scmp.eq.s32.totalorder %s20, 1
      %p64 = por %p62, %p63
      %p66 = scmp.ne.s32.totalorder %s51, %s65
      %p67 = scmp.eq.s32.totalorder %s20, 0
      %p68 = por %p66, %p67
      %s70 = sadd.s32 %s69, 1
      %p73 = scmp.eq.s32.totalorder %s14, 1
      %p74 = scmp.ne.s32.totalorder %s69, %s71
      %p75 = scmp.eq.s32.totalorder %s14, 0
      %p76 = por %p74, %p75
      %p77 = scmp.ne.s32.totalorder %s69, %s71
      %p78 = scmp.eq.s32.totalorder %s19, 1
      %p79 = por %p77, %p78
      %p80 = scmp.ne.s32.totalorder %s71, %s72
      %p81 = scmp.eq.s32.totalorder %s19, 0
      %p82 = por %p80, %p81
      %p83 = scmp.ne.s32.totalorder %s71, %s72
      %p84 = scmp.eq.s32.totalorder %s20, 1
      %p85 = por %p83, %p84
      %p87 = scmp.ne.s32.totalorder %s72, %s86
      %p88 = scmp.eq.s32.totalorder %s20, 0
      %p89 = por %p87, %p88
      %s91 = sadd.s32 %s90, 1
      %p94 = scmp.eq.s32.totalorder %s14, 1
      %p95 = scmp.ne.s32.totalorder %s90, %s92
      %p96 = scmp.eq.s32.totalorder %s14, 0
      %p97 = por %p95, %p96
      %p98 = scmp.ne.s32.totalorder %s90, %s92
      %p99 = scmp.eq.s32.totalorder %s19, 1
      %p100 = por %p98, %p99
      %p101 = scmp.ne.s32.totalorder %s92, %s93
      %p102 = scmp.eq.s32.totalorder %s19, 0
      %p103 = por %p101, %p102
      %p104 = scmp.ne.s32.totalorder %s92, %s93
      %p105 = scmp.eq.s32.totalorder %s20, 1
      %p106 = por %p104, %p105
      %p108 = scmp.ne.s32.totalorder %s93, %s107
      %p109 = scmp.eq.s32.totalorder %s20, 0
      %p110 = por %p108, %p109
      %s111 = ssub.s32 %s14, %s21
      %p112 = scmp.eq.s32.totalorder %s111, 0
      %s114 = sadd.s32 %s113, 1
      %s115 = scalar_select %p112, %s113, %s114
      %p118 = pneg %p112
      %p119 = scmp.eq.s32.totalorder %s14, 1
      %p120 = por %p118, %p119
      %p121 = scmp.ne.s32.totalorder %s113, %s116
      %p122 = scmp.eq.s32.totalorder %s14, 0
      %p123 = por %p121, %p122
      %p124 = scmp.ne.s32.totalorder %s113, %s116
      %p125 = scmp.eq.s32.totalorder %s19, 1
      %p126 = por %p124, %p125
      %p127 = scmp.ne.s32.totalorder %s116, %s117
      %p128 = scmp.eq.s32.totalorder %s19, 0
      %p129 = por %p127, %p128
      %p130 = scmp.ne.s32.totalorder %s116, %s117
      %p131 = scmp.eq.s32.totalorder %s20, 1
      %p132 = por %p130, %p131
      %p134 = scmp.ne.s32.totalorder %s117, %s133
      %p135 = scmp.eq.s32.totalorder %s20, 0
      %p136 = por %p134, %p135
      %p137 = scmp.le.s32.totalorder 1, %s14
      %p138 = scmp.lt.s32.totalorder %s14, 3
      %p139 = pnand %p137, %p138
      %p140 = pneg %p139
      // Predicated region
      $region9: #{tpu_custom_call.1} parent=5 // pred_check
        _
      $region10: #{tpu_custom_call.1} parent=5 // pred_check_branch
        %142 = sbr.rel (%p139) target = $region12
      $region11: #{tpu_custom_call.1} parent=5 // pred_region
        %s143 = ssub.s32 %s14, 1
        // Predicated region
        $region13: #{tpu_custom_call.1} parent=11 // pred_check
          %p144 = pneg %p61
        $region14: #{tpu_custom_call.1} parent=11 // pred_check_branch
          %146 = sbr.rel (%p144) target = $region16
        $region15: #{tpu_custom_call.1} parent=11 // pred_region
          %148 = vsyncadd [#allocation3], 0
          %s149 = sshll.u32 %s1, 4
          %s150 = int_to_ptr.hbm [resolvable:$true] %s149
          %s151 = sshll.u32 [#allocation2], 4
          %s152 = int_to_ptr.vmem [resolvable:$true] %s151
          %157 = dma.hbm_to_vmem [thread:$0]  %s150, 8192, %s152, [#allocation3], 128, 128, 8
        $region16: #{tpu_custom_call.1} parent=11 // pred_fallthru
          _
        // Predicated region
        $region17: #{tpu_custom_call.1} parent=11 // pred_check
          %p158 = pneg %p82
        $region18: #{tpu_custom_call.1} parent=11 // pred_check_branch
          %160 = sbr.rel (%p158) target = $region20
        $region19: #{tpu_custom_call.1} parent=11 // pred_region
          _
        $region20: #{tpu_custom_call.1} parent=11 // pred_fallthru
          _
        // Predicated region
        $region21: #{tpu_custom_call.1} parent=11 // pred_check
          %p161 = pneg %p103
        $region22: #{tpu_custom_call.1} parent=11 // pred_check_branch
          %163 = sbr.rel (%p161) target = $region24
        $region23: #{tpu_custom_call.1} parent=11 // pred_region
          _
        $region24: #{tpu_custom_call.1} parent=11 // pred_fallthru
          _
      $region12: #{tpu_custom_call.1} parent=5 // pred_fallthru
        _
      %p164 = scmp.lt.s32.totalorder %s14, 2
      // Predicated region
      $region25: #{tpu_custom_call.1} parent=5 // pred_check
        %p165 = pneg %p164
      $region26: #{tpu_custom_call.1} parent=5 // pred_check_branch
        %167 = sbr.rel (%p165) target = $region28
      $region27: #{tpu_custom_call.1} parent=5 // pred_region
        // Predicated region
        $region29: #{tpu_custom_call.1} parent=27 // pred_check
          %p168 = pneg %p34
        $region30: #{tpu_custom_call.1} parent=27 // pred_check_branch
          %170 = sbr.rel (%p168) target = $region32
        $region31: #{tpu_custom_call.1} parent=27 // pred_region
          %s171 = smul.u32 16, %s14
          %p172 = scmp.lt.s32.totalorder %s171, 31
          %s173 = scalar_select %p172, %s171, 31
          %s174 = smul.addr %s173, 8
          %s175 = scalar_lea.vmem %s0, %s174
          %s176 = smul.u32 16, %s14
        $region32: #{tpu_custom_call.1} parent=27 // pred_fallthru
          _
      $region28: #{tpu_custom_call.1} parent=5 // pred_fallthru
        _
      %p177 = scmp.le.s32.totalorder 1, %s14
      %p178 = scmp.lt.s32.totalorder %s14, 3
      %p179 = pnand %p177, %p178
      %p180 = pneg %p179
      // Predicated region
      $region33: #{tpu_custom_call.1} parent=5 // pred_check
        _
      $region34: #{tpu_custom_call.1} parent=5 // pred_check_branch
        %182 = sbr.rel (%p179) target = $region36
      $region35: #{tpu_custom_call.1} parent=5 // pred_region
        %s183 = ssub.s32 %s14, 1
        // Predicated region
        $region37: #{tpu_custom_call.1} parent=35 // pred_check
          %p184 = pneg %p61
        $region38: #{tpu_custom_call.1} parent=35 // pred_check_branch
          %186 = sbr.rel (%p184) target = $region40
        $region39: #{tpu_custom_call.1} parent=35 // pred_region
          %188 = dma.done [#allocation3], 8192
        $region40: #{tpu_custom_call.1} parent=35 // pred_fallthru
          _
        %s189 = smul.u32 16, %s19
        %p190 = scmp.lt.s32.totalorder %s189, 31
        %s191 = scalar_select %p190, %s189, 31
        %s192 = smul.addr %s191, 8
        %s193 = scalar_lea.vmem %s0, %s192
        %p194 = pneg %p40
        %p195 = pneg %p37
        %p196 = pneg %p61
        %p197 = pneg %p58
        %p198 = pneg %p82
        %p199 = pneg %p79
        %p200 = pneg %p103
        %p201 = pneg %p100
        %p202 = pneg %p129
        %p203 = pneg %p126
        %s204 = sand.u32 %s116, 1
        %s205 = scalar_lea.sflag [#allocation4], %s204
        %s206 = sand.u32 %s116, 1
        %s207 = smul.addr %s206, 128
        %s208 = scalar_lea.vmem [#allocation5], %s207
        %s209 = smul.u32 16, %s19
        %p210 = scmp.lt.s32.totalorder %s209, 31
        %s211 = scalar_select %p210, %s209, 31
        %s212 = smul.addr %s211, 8
        %s213 = scalar_lea.vmem %s0, %s212
        %s214 = smul.u32 16, %s19
        %s215 = smul.u32 16, %s19
        %v216 = vld [vmem:[%s213] sm:$0xff]
        %v217 = vld [vmem:[%s213 + $0x8] sm:$0xff]
        %v218 = vld [vmem:[%s213 + $0x10] sm:$0xff]
        %v219 = vld [vmem:[%s213 + $0x18] sm:$0xff]
        %v220 = vld [vmem:[%s213 + $0x20] sm:$0xff]
        %v221 = vld [vmem:[%s213 + $0x28] sm:$0xff]
        %v222 = vld [vmem:[%s213 + $0x30] sm:$0xff]
        %v223 = vld [vmem:[%s213 + $0x38] sm:$0xff]
        %v224 = vld [vmem:[%s213 + $0x40] sm:$0xff]
        %v225 = vld [vmem:[%s213 + $0x48] sm:$0xff]
        %v226 = vld [vmem:[%s213 + $0x50] sm:$0xff]
        %v227 = vld [vmem:[%s213 + $0x58] sm:$0xff]
        %v228 = vld [vmem:[%s213 + $0x60] sm:$0xff]
        %v229 = vld [vmem:[%s213 + $0x68] sm:$0xff]
        %v230 = vld [vmem:[%s213 + $0x70] sm:$0xff]
        %v231 = vld [vmem:[%s213 + $0x78] sm:$0xff]
        %v232 = vlaneseq
        %v233 = vand.u32 %v232, 127
        %v234 = vadd.s32 %v233, 128
        %v235 = vadd.s32 %v233, 256
        %v236 = vadd.s32 %v233, 384
        %237 = vset.pattern.permute.xlu0 0
        %238 = vperm.xlu0 %237, %v216
        %v239 = vpop.permute.xlu0 %238
        %240 = vset.pattern.permute.xlu0 0
        %241 = vperm.xlu0 %240, %v217
        %v242 = vpop.permute.xlu0 %241
        %243 = vset.pattern.permute.xlu0 0
        %244 = vperm.xlu0 %243, %v218
        %v245 = vpop.permute.xlu0 %244
        %246 = vset.pattern.permute.xlu0 0
        %247 = vperm.xlu0 %246, %v219
        %v248 = vpop.permute.xlu0 %247
        %249 = vset.pattern.permute.xlu0 0
        %250 = vperm.xlu0 %249, %v220
        %v251 = vpop.permute.xlu0 %250
        %252 = vset.pattern.permute.xlu0 0
        %253 = vperm.xlu0 %252, %v221
        %v254 = vpop.permute.xlu0 %253
        %255 = vset.pattern.permute.xlu0 0
        %256 = vperm.xlu0 %255, %v222
        %v257 = vpop.permute.xlu0 %256
        %258 = vset.pattern.permute.xlu0 0
        %259 = vperm.xlu0 %258, %v223
        %v260 = vpop.permute.xlu0 %259
        %261 = vset.pattern.permute.xlu0 0
        %262 = vperm.xlu0 %261, %v224
        %v263 = vpop.permute.xlu0 %262
        %264 = vset.pattern.permute.xlu0 0
        %265 = vperm.xlu0 %264, %v225
        %v266 = vpop.permute.xlu0 %265
        %267 = vset.pattern.permute.xlu0 0
        %268 = vperm.xlu0 %267, %v226
        %v269 = vpop.permute.xlu0 %268
        %270 = vset.pattern.permute.xlu0 0
        %271 = vperm.xlu0 %270, %v227
        %v272 = vpop.permute.xlu0 %271
        %273 = vset.pattern.permute.xlu0 0
        %274 = vperm.xlu0 %273, %v228
        %v275 = vpop.permute.xlu0 %274
        %276 = vset.pattern.permute.xlu0 0
        %277 = vperm.xlu0 %276, %v229
        %v278 = vpop.permute.xlu0 %277
        %279 = vset.pattern.permute.xlu0 0
        %280 = vperm.xlu0 %279, %v230
        %v281 = vpop.permute.xlu0 %280
        %282 = vset.pattern.permute.xlu0 0
        %283 = vperm.xlu0 %282, %v231
        %v284 = vpop.permute.xlu0 %283
        %vm285 = vcmp.eq.s32.totalorder %v233, %v239
        %vm286 = vcmp.eq.s32.totalorder %v234, %v239
        %vm287 = vcmp.eq.s32.totalorder %v235, %v239
        %vm288 = vcmp.eq.s32.totalorder %v236, %v239
        %vm289 = vcmp.eq.s32.totalorder %v233, %v242
        %vm290 = vcmp.eq.s32.totalorder %v234, %v242
        %vm291 = vcmp.eq.s32.totalorder %v235, %v242
        %vm292 = vcmp.eq.s32.totalorder %v236, %v242
        %vm293 = vcmp.eq.s32.totalorder %v233, %v245
        %vm294 = vcmp.eq.s32.totalorder %v234, %v245
        %vm295 = vcmp.eq.s32.totalorder %v235, %v245
        %vm296 = vcmp.eq.s32.totalorder %v236, %v245
        %vm297 = vcmp.eq.s32.totalorder %v233, %v248
        %vm298 = vcmp.eq.s32.totalorder %v234, %v248
        %vm299 = vcmp.eq.s32.totalorder %v235, %v248
        %vm300 = vcmp.eq.s32.totalorder %v236, %v248
        %vm301 = vcmp.eq.s32.totalorder %v233, %v251
        %vm302 = vcmp.eq.s32.totalorder %v234, %v251
        %vm303 = vcmp.eq.s32.totalorder %v235, %v251
        %vm304 = vcmp.eq.s32.totalorder %v236, %v251
        %vm305 = vcmp.eq.s32.totalorder %v233, %v254
        %vm306 = vcmp.eq.s32.totalorder %v234, %v254
        %vm307 = vcmp.eq.s32.totalorder %v235, %v254
        %vm308 = vcmp.eq.s32.totalorder %v236, %v254
        %vm309 = vcmp.eq.s32.totalorder %v233, %v257
        %vm310 = vcmp.eq.s32.totalorder %v234, %v257
        %vm311 = vcmp.eq.s32.totalorder %v235, %v257
        %vm312 = vcmp.eq.s32.totalorder %v236, %v257
        %vm313 = vcmp.eq.s32.totalorder %v233, %v260
        %vm314 = vcmp.eq.s32.totalorder %v234, %v260
        %vm315 = vcmp.eq.s32.totalorder %v235, %v260
        %vm316 = vcmp.eq.s32.totalorder %v236, %v260
        %vm317 = vcmp.eq.s32.totalorder %v233, %v263
        %vm318 = vcmp.eq.s32.totalorder %v234, %v263
        %vm319 = vcmp.eq.s32.totalorder %v235, %v263
        %vm320 = vcmp.eq.s32.totalorder %v236, %v263
        %vm321 = vcmp.eq.s32.totalorder %v233, %v266
        %vm322 = vcmp.eq.s32.totalorder %v234, %v266
        %vm323 = vcmp.eq.s32.totalorder %v235, %v266
        %vm324 = vcmp.eq.s32.totalorder %v236, %v266
        %vm325 = vcmp.eq.s32.totalorder %v233, %v269
        %vm326 = vcmp.eq.s32.totalorder %v234, %v269
        %vm327 = vcmp.eq.s32.totalorder %v235, %v269
        %vm328 = vcmp.eq.s32.totalorder %v236, %v269
        %vm329 = vcmp.eq.s32.totalorder %v233, %v272
        %vm330 = vcmp.eq.s32.totalorder %v234, %v272
        %vm331 = vcmp.eq.s32.totalorder %v235, %v272
        %vm332 = vcmp.eq.s32.totalorder %v236, %v272
        %vm333 = vcmp.eq.s32.totalorder %v233, %v275
        %vm334 = vcmp.eq.s32.totalorder %v234, %v275
        %vm335 = vcmp.eq.s32.totalorder %v235, %v275
        %vm336 = vcmp.eq.s32.totalorder %v236, %v275
        %vm337 = vcmp.eq.s32.totalorder %v233, %v278
        %vm338 = vcmp.eq.s32.totalorder %v234, %v278
        %vm339 = vcmp.eq.s32.totalorder %v235, %v278
        %vm340 = vcmp.eq.s32.totalorder %v236, %v278
        %vm341 = vcmp.eq.s32.totalorder %v233, %v281
        %vm342 = vcmp.eq.s32.totalorder %v234, %v281
        %vm343 = vcmp.eq.s32.totalorder %v235, %v281
        %vm344 = vcmp.eq.s32.totalorder %v236, %v281
        %vm345 = vcmp.eq.s32.totalorder %v233, %v284
        %vm346 = vcmp.eq.s32.totalorder %v234, %v284
        %vm347 = vcmp.eq.s32.totalorder %v235, %v284
        %vm348 = vcmp.eq.s32.totalorder %v236, %v284
        %349 = vset.pattern.permute.xlu0 1
        %350 = vperm.xlu0 %349, %v216
        %v351 = vpop.permute.xlu0 %350
        %352 = vset.pattern.permute.xlu0 1
        %353 = vperm.xlu0 %352, %v217
        %v354 = vpop.permute.xlu0 %353
        %355 = vset.pattern.permute.xlu0 1
        %356 = vperm.xlu0 %355, %v218
        %v357 = vpop.permute.xlu0 %356
        %358 = vset.pattern.permute.xlu0 1
        %359 = vperm.xlu0 %358, %v219
        %v360 = vpop.permute.xlu0 %359
        %361 = vset.pattern.permute.xlu0 1
        %362 = vperm.xlu0 %361, %v220
        %v363 = vpop.permute.xlu0 %362
        %364 = vset.pattern.permute.xlu0 1
        %365 = vperm.xlu0 %364, %v221
        %v366 = vpop.permute.xlu0 %365
        %367 = vset.pattern.permute.xlu0 1
        %368 = vperm.xlu0 %367, %v222
        %v369 = vpop.permute.xlu0 %368
        %370 = vset.pattern.permute.xlu0 1
        %371 = vperm.xlu0 %370, %v223
        %v372 = vpop.permute.xlu0 %371
        %373 = vset.pattern.permute.xlu0 1
        %374 = vperm.xlu0 %373, %v224
        %v375 = vpop.permute.xlu0 %374
        %376 = vset.pattern.permute.xlu0 1
        %377 = vperm.xlu0 %376, %v225
        %v378 = vpop.permute.xlu0 %377
        %379 = vset.pattern.permute.xlu0 1
        %380 = vperm.xlu0 %379, %v226
        %v381 = vpop.permute.xlu0 %380
        %382 = vset.pattern.permute.xlu0 1
        %383 = vperm.xlu0 %382, %v227
        %v384 = vpop.permute.xlu0 %383
        %385 = vset.pattern.permute.xlu0 1
        %386 = vperm.xlu0 %385, %v228
        %v387 = vpop.permute.xlu0 %386
        %388 = vset.pattern.permute.xlu0 1
        %389 = vperm.xlu0 %388, %v229
        %v390 = vpop.permute.xlu0 %389
        %391 = vset.pattern.permute.xlu0 1
        %392 = vperm.xlu0 %391, %v230
        %v393 = vpop.permute.xlu0 %392
        %394 = vset.pattern.permute.xlu0 1
        %395 = vperm.xlu0 %394, %v231
        %v396 = vpop.permute.xlu0 %395
        %vm397 = vcmp.eq.s32.totalorder %v233, %v351
        %vm398 = vcmp.eq.s32.totalorder %v234, %v351
        %vm399 = vcmp.eq.s32.totalorder %v235, %v351
        %vm400 = vcmp.eq.s32.totalorder %v236, %v351
        %vm401 = vcmp.eq.s32.totalorder %v233, %v354
        %vm402 = vcmp.eq.s32.totalorder %v234, %v354
        %vm403 = vcmp.eq.s32.totalorder %v235, %v354
        %vm404 = vcmp.eq.s32.totalorder %v236, %v354
        %vm405 = vcmp.eq.s32.totalorder %v233, %v357
        %vm406 = vcmp.eq.s32.totalorder %v234, %v357
        %vm407 = vcmp.eq.s32.totalorder %v235, %v357
        %vm408 = vcmp.eq.s32.totalorder %v236, %v357
        %vm409 = vcmp.eq.s32.totalorder %v233, %v360
        %vm410 = vcmp.eq.s32.totalorder %v234, %v360
        %vm411 = vcmp.eq.s32.totalorder %v235, %v360
        %vm412 = vcmp.eq.s32.totalorder %v236, %v360
        %vm413 = vcmp.eq.s32.totalorder %v233, %v363
        %vm414 = vcmp.eq.s32.totalorder %v234, %v363
        %vm415 = vcmp.eq.s32.totalorder %v235, %v363
        %vm416 = vcmp.eq.s32.totalorder %v236, %v363
        %vm417 = vcmp.eq.s32.totalorder %v233, %v366
        %vm418 = vcmp.eq.s32.totalorder %v234, %v366
        %vm419 = vcmp.eq.s32.totalorder %v235, %v366
        %vm420 = vcmp.eq.s32.totalorder %v236, %v366
        %vm421 = vcmp.eq.s32.totalorder %v233, %v369
        %vm422 = vcmp.eq.s32.totalorder %v234, %v369
        %vm423 = vcmp.eq.s32.totalorder %v235, %v369
        %vm424 = vcmp.eq.s32.totalorder %v236, %v369
        %vm425 = vcmp.eq.s32.totalorder %v233, %v372
        %vm426 = vcmp.eq.s32.totalorder %v234, %v372
        %vm427 = vcmp.eq.s32.totalorder %v235, %v372
        %vm428 = vcmp.eq.s32.totalorder %v236, %v372
        %vm429 = vcmp.eq.s32.totalorder %v233, %v375
        %vm430 = vcmp.eq.s32.totalorder %v234, %v375
        %vm431 = vcmp.eq.s32.totalorder %v235, %v375
        %vm432 = vcmp.eq.s32.totalorder %v236, %v375
        %vm433 = vcmp.eq.s32.totalorder %v233, %v378
        %vm434 = vcmp.eq.s32.totalorder %v234, %v378
        %vm435 = vcmp.eq.s32.totalorder %v235, %v378
        %vm436 = vcmp.eq.s32.totalorder %v236, %v378
        %vm437 = vcmp.eq.s32.totalorder %v233, %v381
        %vm438 = vcmp.eq.s32.totalorder %v234, %v381
        %vm439 = vcmp.eq.s32.totalorder %v235, %v381
        %vm440 = vcmp.eq.s32.totalorder %v236, %v381
        %vm441 = vcmp.eq.s32.totalorder %v233, %v384
        %vm442 = vcmp.eq.s32.totalorder %v234, %v384
        %vm443 = vcmp.eq.s32.totalorder %v235, %v384
        %vm444 = vcmp.eq.s32.totalorder %v236, %v384
        %vm445 = vcmp.eq.s32.totalorder %v233, %v387
        %vm446 = vcmp.eq.s32.totalorder %v234, %v387
        %vm447 = vcmp.eq.s32.totalorder %v235, %v387
        %vm448 = vcmp.eq.s32.totalorder %v236, %v387
        %vm449 = vcmp.eq.s32.totalorder %v233, %v390
        %vm450 = vcmp.eq.s32.totalorder %v234, %v390
        %vm451 = vcmp.eq.s32.totalorder %v235, %v390
        %vm452 = vcmp.eq.s32.totalorder %v236, %v390
        %vm453 = vcmp.eq.s32.totalorder %v233, %v393
        %vm454 = vcmp.eq.s32.totalorder %v234, %v393
        %vm455 = vcmp.eq.s32.totalorder %v235, %v393
        %vm456 = vcmp.eq.s32.totalorder %v236, %v393
        %vm457 = vcmp.eq.s32.totalorder %v233, %v396
        %vm458 = vcmp.eq.s32.totalorder %v234, %v396
        %vm459 = vcmp.eq.s32.totalorder %v235, %v396
        %vm460 = vcmp.eq.s32.totalorder %v236, %v396
        %vm461 = vmor %vm285, %vm397
        %vm462 = vmor %vm286, %vm398
        %vm463 = vmor %vm287, %vm399
        %vm464 = vmor %vm288, %vm400
        %vm465 = vmor %vm289, %vm401
        %vm466 = vmor %vm290, %vm402
        %vm467 = vmor %vm291, %vm403
        %vm468 = vmor %vm292, %vm404
        %vm469 = vmor %vm293, %vm405
        %vm470 = vmor %vm294, %vm406
        %vm471 = vmor %vm295, %vm407
        %vm472 = vmor %vm296, %vm408
        %vm473 = vmor %vm297, %vm409
        %vm474 = vmor %vm298, %vm410
        %vm475 = vmor %vm299, %vm411
        %vm476 = vmor %vm300, %vm412
        %vm477 = vmor %vm301, %vm413
        %vm478 = vmor %vm302, %vm414
        %vm479 = vmor %vm303, %vm415
        %vm480 = vmor %vm304, %vm416
        %vm481 = vmor %vm305, %vm417
        %vm482 = vmor %vm306, %vm418
        %vm483 = vmor %vm307, %vm419
        %vm484 = vmor %vm308, %vm420
        %vm485 = vmor %vm309, %vm421
        %vm486 = vmor %vm310, %vm422
        %vm487 = vmor %vm311, %vm423
        %vm488 = vmor %vm312, %vm424
        %vm489 = vmor %vm313, %vm425
        %vm490 = vmor %vm314, %vm426
        %vm491 = vmor %vm315, %vm427
        %vm492 = vmor %vm316, %vm428
        %vm493 = vmor %vm317, %vm429
        %vm494 = vmor %vm318, %vm430
        %vm495 = vmor %vm319, %vm431
        %vm496 = vmor %vm320, %vm432
        %vm497 = vmor %vm321, %vm433
        %vm498 = vmor %vm322, %vm434
        %vm499 = vmor %vm323, %vm435
        %vm500 = vmor %vm324, %vm436
        %vm501 = vmor %vm325, %vm437
        %vm502 = vmor %vm326, %vm438
        %vm503 = vmor %vm327, %vm439
        %vm504 = vmor %vm328, %vm440
        %vm505 = vmor %vm329, %vm441
        %vm506 = vmor %vm330, %vm442
        %vm507 = vmor %vm331, %vm443
        %vm508 = vmor %vm332, %vm444
        %vm509 = vmor %vm333, %vm445
        %vm510 = vmor %vm334, %vm446
        %vm511 = vmor %vm335, %vm447
        %vm512 = vmor %vm336, %vm448
        %vm513 = vmor %vm337, %vm449
        %vm514 = vmor %vm338, %vm450
        %vm515 = vmor %vm339, %vm451
        %vm516 = vmor %vm340, %vm452
        %vm517 = vmor %vm341, %vm453
        %vm518 = vmor %vm342, %vm454
        %vm519 = vmor %vm343, %vm455
        %vm520 = vmor %vm344, %vm456
        %vm521 = vmor %vm345, %vm457
        %vm522 = vmor %vm346, %vm458
        %vm523 = vmor %vm347, %vm459
        %vm524 = vmor %vm348, %vm460
        %525 = vset.pattern.permute.xlu0 2
        %526 = vperm.xlu0 %525, %v216
        %v527 = vpop.permute.xlu0 %526
        %528 = vset.pattern.permute.xlu0 2
        %529 = vperm.xlu0 %528, %v217
        %v530 = vpop.permute.xlu0 %529
        %531 = vset.pattern.permute.xlu0 2
        %532 = vperm.xlu0 %531, %v218
        %v533 = vpop.permute.xlu0 %532
        %534 = vset.pattern.permute.xlu0 2
        %535 = vperm.xlu0 %534, %v219
        %v536 = vpop.permute.xlu0 %535
        %537 = vset.pattern.permute.xlu0 2
        %538 = vperm.xlu0 %537, %v220
        %v539 = vpop.permute.xlu0 %538
        %540 = vset.pattern.permute.xlu0 2
        %541 = vperm.xlu0 %540, %v221
        %v542 = vpop.permute.xlu0 %541
        %543 = vset.pattern.permute.xlu0 2
        %544 = vperm.xlu0 %543, %v222
        %v545 = vpop.permute.xlu0 %544
        %546 = vset.pattern.permute.xlu0 2
        %547 = vperm.xlu0 %546, %v223
        %v548 = vpop.permute.xlu0 %547
        %549 = vset.pattern.permute.xlu0 2
        %550 = vperm.xlu0 %549, %v224
        %v551 = vpop.permute.xlu0 %550
        %552 = vset.pattern.permute.xlu0 2
        %553 = vperm.xlu0 %552, %v225
        %v554 = vpop.permute.xlu0 %553
        %555 = vset.pattern.permute.xlu0 2
        %556 = vperm.xlu0 %555, %v226
        %v557 = vpop.permute.xlu0 %556
        %558 = vset.pattern.permute.xlu0 2
        %559 = vperm.xlu0 %558, %v227
        %v560 = vpop.permute.xlu0 %559
        %561 = vset.pattern.permute.xlu0 2
        %562 = vperm.xlu0 %561, %v228
        %v563 = vpop.permute.xlu0 %562
        %564 = vset.pattern.permute.xlu0 2
        %565 = vperm.xlu0 %564, %v229
        %v566 = vpop.permute.xlu0 %565
        %567 = vset.pattern.permute.xlu0 2
        %568 = vperm.xlu0 %567, %v230
        %v569 = vpop.permute.xlu0 %568
        %570 = vset.pattern.permute.xlu0 2
        %571 = vperm.xlu0 %570, %v231
        %v572 = vpop.permute.xlu0 %571
        %vm573 = vcmp.eq.s32.totalorder %v233, %v527
        %vm574 = vcmp.eq.s32.totalorder %v234, %v527
        %vm575 = vcmp.eq.s32.totalorder %v235, %v527
        %vm576 = vcmp.eq.s32.totalorder %v236, %v527
        %vm577 = vcmp.eq.s32.totalorder %v233, %v530
        %vm578 = vcmp.eq.s32.totalorder %v234, %v530
        %vm579 = vcmp.eq.s32.totalorder %v235, %v530
        %vm580 = vcmp.eq.s32.totalorder %v236, %v530
        %vm581 = vcmp.eq.s32.totalorder %v233, %v533
        %vm582 = vcmp.eq.s32.totalorder %v234, %v533
        %vm583 = vcmp.eq.s32.totalorder %v235, %v533
        %vm584 = vcmp.eq.s32.totalorder %v236, %v533
        %vm585 = vcmp.eq.s32.totalorder %v233, %v536
        %vm586 = vcmp.eq.s32.totalorder %v234, %v536
        %vm587 = vcmp.eq.s32.totalorder %v235, %v536
        %vm588 = vcmp.eq.s32.totalorder %v236, %v536
        %vm589 = vcmp.eq.s32.totalorder %v233, %v539
        %vm590 = vcmp.eq.s32.totalorder %v234, %v539
        %vm591 = vcmp.eq.s32.totalorder %v235, %v539
        %vm592 = vcmp.eq.s32.totalorder %v236, %v539
        %vm593 = vcmp.eq.s32.totalorder %v233, %v542
        %vm594 = vcmp.eq.s32.totalorder %v234, %v542
        %vm595 = vcmp.eq.s32.totalorder %v235, %v542
        %vm596 = vcmp.eq.s32.totalorder %v236, %v542
        %vm597 = vcmp.eq.s32.totalorder %v233, %v545
        %vm598 = vcmp.eq.s32.totalorder %v234, %v545
        %vm599 = vcmp.eq.s32.totalorder %v235, %v545
        %vm600 = vcmp.eq.s32.totalorder %v236, %v545
        %vm601 = vcmp.eq.s32.totalorder %v233, %v548
        %vm602 = vcmp.eq.s32.totalorder %v234, %v548
        %vm603 = vcmp.eq.s32.totalorder %v235, %v548
        %vm604 = vcmp.eq.s32.totalorder %v236, %v548
        %vm605 = vcmp.eq.s32.totalorder %v233, %v551
        %vm606 = vcmp.eq.s32.totalorder %v234, %v551
        %vm607 = vcmp.eq.s32.totalorder %v235, %v551
        %vm608 = vcmp.eq.s32.totalorder %v236, %v551
        %vm609 = vcmp.eq.s32.totalorder %v233, %v554
        %vm610 = vcmp.eq.s32.totalorder %v234, %v554
        %vm611 = vcmp.eq.s32.totalorder %v235, %v554
        %vm612 = vcmp.eq.s32.totalorder %v236, %v554
        %vm613 = vcmp.eq.s32.totalorder %v233, %v557
        %vm614 = vcmp.eq.s32.totalorder %v234, %v557
        %vm615 = vcmp.eq.s32.totalorder %v235, %v557
        %vm616 = vcmp.eq.s32.totalorder %v236, %v557
        %vm617 = vcmp.eq.s32.totalorder %v233, %v560
        %vm618 = vcmp.eq.s32.totalorder %v234, %v560
        %vm619 = vcmp.eq.s32.totalorder %v235, %v560
        %vm620 = vcmp.eq.s32.totalorder %v236, %v560
        %vm621 = vcmp.eq.s32.totalorder %v233, %v563
        %vm622 = vcmp.eq.s32.totalorder %v234, %v563
        %vm623 = vcmp.eq.s32.totalorder %v235, %v563
        %vm624 = vcmp.eq.s32.totalorder %v236, %v563
        %vm625 = vcmp.eq.s32.totalorder %v233, %v566
        %vm626 = vcmp.eq.s32.totalorder %v234, %v566
        %vm627 = vcmp.eq.s32.totalorder %v235, %v566
        %vm628 = vcmp.eq.s32.totalorder %v236, %v566
        %vm629 = vcmp.eq.s32.totalorder %v233, %v569
        %vm630 = vcmp.eq.s32.totalorder %v234, %v569
        %vm631 = vcmp.eq.s32.totalorder %v235, %v569
        %vm632 = vcmp.eq.s32.totalorder %v236, %v569
        %vm633 = vcmp.eq.s32.totalorder %v233, %v572
        %vm634 = vcmp.eq.s32.totalorder %v234, %v572
        %vm635 = vcmp.eq.s32.totalorder %v235, %v572
        %vm636 = vcmp.eq.s32.totalorder %v236, %v572
        %vm637 = vmor %vm461, %vm573
        %vm638 = vmor %vm462, %vm574
        %vm639 = vmor %vm463, %vm575
        %vm640 = vmor %vm464, %vm576
        %vm641 = vmor %vm465, %vm577
        %vm642 = vmor %vm466, %vm578
        %vm643 = vmor %vm467, %vm579
        %vm644 = vmor %vm468, %vm580
        %vm645 = vmor %vm469, %vm581
        %vm646 = vmor %vm470, %vm582
        %vm647 = vmor %vm471, %vm583
        %vm648 = vmor %vm472, %vm584
        %vm649 = vmor %vm473, %vm585
        %vm650 = vmor %vm474, %vm586
        %vm651 = vmor %vm475, %vm587
        %vm652 = vmor %vm476, %vm588
        %vm653 = vmor %vm477, %vm589
        %vm654 = vmor %vm478, %vm590
        %vm655 = vmor %vm479, %vm591
        %vm656 = vmor %vm480, %vm592
        %vm657 = vmor %vm481, %vm593
        %vm658 = vmor %vm482, %vm594
        %vm659 = vmor %vm483, %vm595
        %vm660 = vmor %vm484, %vm596
        %vm661 = vmor %vm485, %vm597
        %vm662 = vmor %vm486, %vm598
        %vm663 = vmor %vm487, %vm599
        %vm664 = vmor %vm488, %vm600
        %vm665 = vmor %vm489, %vm601
        %vm666 = vmor %vm490, %vm602
        %vm667 = vmor %vm491, %vm603
        %vm668 = vmor %vm492, %vm604
        %vm669 = vmor %vm493, %vm605
        %vm670 = vmor %vm494, %vm606
        %vm671 = vmor %vm495, %vm607
        %vm672 = vmor %vm496, %vm608
        %vm673 = vmor %vm497, %vm609
        %vm674 = vmor %vm498, %vm610
        %vm675 = vmor %vm499, %vm611
        %vm676 = vmor %vm500, %vm612
        %vm677 = vmor %vm501, %vm613
        %vm678 = vmor %vm502, %vm614
        %vm679 = vmor %vm503, %vm615
        %vm680 = vmor %vm504, %vm616
        %vm681 = vmor %vm505, %vm617
        %vm682 = vmor %vm506, %vm618
        %vm683 = vmor %vm507, %vm619
        %vm684 = vmor %vm508, %vm620
        %vm685 = vmor %vm509, %vm621
        %vm686 = vmor %vm510, %vm622
        %vm687 = vmor %vm511, %vm623
        %vm688 = vmor %vm512, %vm624
        %vm689 = vmor %vm513, %vm625
        %vm690 = vmor %vm514, %vm626
        %vm691 = vmor %vm515, %vm627
        %vm692 = vmor %vm516, %vm628
        %vm693 = vmor %vm517, %vm629
        %vm694 = vmor %vm518, %vm630
        %vm695 = vmor %vm519, %vm631
        %vm696 = vmor %vm520, %vm632
        %vm697 = vmor %vm521, %vm633
        %vm698 = vmor %vm522, %vm634
        %vm699 = vmor %vm523, %vm635
        %vm700 = vmor %vm524, %vm636
        %701 = vset.pattern.permute.xlu0 3
        %702 = vperm.xlu0 %701, %v216
        %v703 = vpop.permute.xlu0 %702
        %704 = vset.pattern.permute.xlu0 3
        %705 = vperm.xlu0 %704, %v217
        %v706 = vpop.permute.xlu0 %705
        %707 = vset.pattern.permute.xlu0 3
        %708 = vperm.xlu0 %707, %v218
        %v709 = vpop.permute.xlu0 %708
        %710 = vset.pattern.permute.xlu0 3
        %711 = vperm.xlu0 %710, %v219
        %v712 = vpop.permute.xlu0 %711
        %713 = vset.pattern.permute.xlu0 3
        %714 = vperm.xlu0 %713, %v220
        %v715 = vpop.permute.xlu0 %714
        %716 = vset.pattern.permute.xlu0 3
        %717 = vperm.xlu0 %716, %v221
        %v718 = vpop.permute.xlu0 %717
        %719 = vset.pattern.permute.xlu0 3
        %720 = vperm.xlu0 %719, %v222
        %v721 = vpop.permute.xlu0 %720
        %722 = vset.pattern.permute.xlu0 3
        %723 = vperm.xlu0 %722, %v223
        %v724 = vpop.permute.xlu0 %723
        %725 = vset.pattern.permute.xlu0 3
        %726 = vperm.xlu0 %725, %v224
        %v727 = vpop.permute.xlu0 %726
        %728 = vset.pattern.permute.xlu0 3
        %729 = vperm.xlu0 %728, %v225
        %v730 = vpop.permute.xlu0 %729
        %731 = vset.pattern.permute.xlu0 3
        %732 = vperm.xlu0 %731, %v226
        %v733 = vpop.permute.xlu0 %732
        %734 = vset.pattern.permute.xlu0 3
        %735 = vperm.xlu0 %734, %v227
        %v736 = vpop.permute.xlu0 %735
        %737 = vset.pattern.permute.xlu0 3
        %738 = vperm.xlu0 %737, %v228
        %v739 = vpop.permute.xlu0 %738
        %740 = vset.pattern.permute.xlu0 3
        %741 = vperm.xlu0 %740, %v229
        %v742 = vpop.permute.xlu0 %741
        %743 = vset.pattern.permute.xlu0 3
        %744 = vperm.xlu0 %743, %v230
        %v745 = vpop.permute.xlu0 %744
        %746 = vset.pattern.permute.xlu0 3
        %747 = vperm.xlu0 %746, %v231
        %v748 = vpop.permute.xlu0 %747
        %vm749 = vcmp.eq.s32.totalorder %v233, %v703
        %vm750 = vcmp.eq.s32.totalorder %v234, %v703
        %vm751 = vcmp.eq.s32.totalorder %v235, %v703
        %vm752 = vcmp.eq.s32.totalorder %v236, %v703
        %vm753 = vcmp.eq.s32.totalorder %v233, %v706
        %vm754 = vcmp.eq.s32.totalorder %v234, %v706
        %vm755 = vcmp.eq.s32.totalorder %v235, %v706
        %vm756 = vcmp.eq.s32.totalorder %v236, %v706
        %vm757 = vcmp.eq.s32.totalorder %v233, %v709
        %vm758 = vcmp.eq.s32.totalorder %v234, %v709
        %vm759 = vcmp.eq.s32.totalorder %v235, %v709
        %vm760 = vcmp.eq.s32.totalorder %v236, %v709
        %vm761 = vcmp.eq.s32.totalorder %v233, %v712
        %vm762 = vcmp.eq.s32.totalorder %v234, %v712
        %vm763 = vcmp.eq.s32.totalorder %v235, %v712
        %vm764 = vcmp.eq.s32.totalorder %v236, %v712
        %vm765 = vcmp.eq.s32.totalorder %v233, %v715
        %vm766 = vcmp.eq.s32.totalorder %v234, %v715
        %vm767 = vcmp.eq.s32.totalorder %v235, %v715
        %vm768 = vcmp.eq.s32.totalorder %v236, %v715
        %vm769 = vcmp.eq.s32.totalorder %v233, %v718
        %vm770 = vcmp.eq.s32.totalorder %v234, %v718
        %vm771 = vcmp.eq.s32.totalorder %v235, %v718
        %vm772 = vcmp.eq.s32.totalorder %v236, %v718
        %vm773 = vcmp.eq.s32.totalorder %v233, %v721
        %vm774 = vcmp.eq.s32.totalorder %v234, %v721
        %vm775 = vcmp.eq.s32.totalorder %v235, %v721
        %vm776 = vcmp.eq.s32.totalorder %v236, %v721
        %vm777 = vcmp.eq.s32.totalorder %v233, %v724
        %vm778 = vcmp.eq.s32.totalorder %v234, %v724
        %vm779 = vcmp.eq.s32.totalorder %v235, %v724
        %vm780 = vcmp.eq.s32.totalorder %v236, %v724
        %vm781 = vcmp.eq.s32.totalorder %v233, %v727
        %vm782 = vcmp.eq.s32.totalorder %v234, %v727
        %vm783 = vcmp.eq.s32.totalorder %v235, %v727
        %vm784 = vcmp.eq.s32.totalorder %v236, %v727
        %vm785 = vcmp.eq.s32.totalorder %v233, %v730
        %vm786 = vcmp.eq.s32.totalorder %v234, %v730
        %vm787 = vcmp.eq.s32.totalorder %v235, %v730
        %vm788 = vcmp.eq.s32.totalorder %v236, %v730
        %vm789 = vcmp.eq.s32.totalorder %v233, %v733
        %vm790 = vcmp.eq.s32.totalorder %v234, %v733
        %vm791 = vcmp.eq.s32.totalorder %v235, %v733
        %vm792 = vcmp.eq.s32.totalorder %v236, %v733
        %vm793 = vcmp.eq.s32.totalorder %v233, %v736
        %vm794 = vcmp.eq.s32.totalorder %v234, %v736
        %vm795 = vcmp.eq.s32.totalorder %v235, %v736
        %vm796 = vcmp.eq.s32.totalorder %v236, %v736
        %vm797 = vcmp.eq.s32.totalorder %v233, %v739
        %vm798 = vcmp.eq.s32.totalorder %v234, %v739
        %vm799 = vcmp.eq.s32.totalorder %v235, %v739
        %vm800 = vcmp.eq.s32.totalorder %v236, %v739
        %vm801 = vcmp.eq.s32.totalorder %v233, %v742
        %vm802 = vcmp.eq.s32.totalorder %v234, %v742
        %vm803 = vcmp.eq.s32.totalorder %v235, %v742
        %vm804 = vcmp.eq.s32.totalorder %v236, %v742
        %vm805 = vcmp.eq.s32.totalorder %v233, %v745
        %vm806 = vcmp.eq.s32.totalorder %v234, %v745
        %vm807 = vcmp.eq.s32.totalorder %v235, %v745
        %vm808 = vcmp.eq.s32.totalorder %v236, %v745
        %vm809 = vcmp.eq.s32.totalorder %v233, %v748
        %vm810 = vcmp.eq.s32.totalorder %v234, %v748
        %vm811 = vcmp.eq.s32.totalorder %v235, %v748
        %vm812 = vcmp.eq.s32.totalorder %v236, %v748
        %vm813 = vmor %vm637, %vm749
        %vm814 = vmor %vm638, %vm750
        %vm815 = vmor %vm639, %vm751
        %vm816 = vmor %vm640, %vm752
        %vm817 = vmor %vm641, %vm753
        %vm818 = vmor %vm642, %vm754
        %vm819 = vmor %vm643, %vm755
        %vm820 = vmor %vm644, %vm756
        %vm821 = vmor %vm645, %vm757
        %vm822 = vmor %vm646, %vm758
        %vm823 = vmor %vm647, %vm759
        %vm824 = vmor %vm648, %vm760
        %vm825 = vmor %vm649, %vm761
        %vm826 = vmor %vm650, %vm762
        %vm827 = vmor %vm651, %vm763
        %vm828 = vmor %vm652, %vm764
        %vm829 = vmor %vm653, %vm765
        %vm830 = vmor %vm654, %vm766
        %vm831 = vmor %vm655, %vm767
        %vm832 = vmor %vm656, %vm768
        %vm833 = vmor %vm657, %vm769
        %vm834 = vmor %vm658, %vm770
        %vm835 = vmor %vm659, %vm771
        %vm836 = vmor %vm660, %vm772
        %vm837 = vmor %vm661, %vm773
        %vm838 = vmor %vm662, %vm774
        %vm839 = vmor %vm663, %vm775
        %vm840 = vmor %vm664, %vm776
        %vm841 = vmor %vm665, %vm777
        %vm842 = vmor %vm666, %vm778
        %vm843 = vmor %vm667, %vm779
        %vm844 = vmor %vm668, %vm780
        %vm845 = vmor %vm669, %vm781
        %vm846 = vmor %vm670, %vm782
        %vm847 = vmor %vm671, %vm783
        %vm848 = vmor %vm672, %vm784
        %vm849 = vmor %vm673, %vm785
        %vm850 = vmor %vm674, %vm786
        %vm851 = vmor %vm675, %vm787
        %vm852 = vmor %vm676, %vm788
        %vm853 = vmor %vm677, %vm789
        %vm854 = vmor %vm678, %vm790
        %vm855 = vmor %vm679, %vm791
        %vm856 = vmor %vm680, %vm792
        %vm857 = vmor %vm681, %vm793
        %vm858 = vmor %vm682, %vm794
        %vm859 = vmor %vm683, %vm795
        %vm860 = vmor %vm684, %vm796
        %vm861 = vmor %vm685, %vm797
        %vm862 = vmor %vm686, %vm798
        %vm863 = vmor %vm687, %vm799
        %vm864 = vmor %vm688, %vm800
        %vm865 = vmor %vm689, %vm801
        %vm866 = vmor %vm690, %vm802
        %vm867 = vmor %vm691, %vm803
        %vm868 = vmor %vm692, %vm804
        %vm869 = vmor %vm693, %vm805
        %vm870 = vmor %vm694, %vm806
        %vm871 = vmor %vm695, %vm807
        %vm872 = vmor %vm696, %vm808
        %vm873 = vmor %vm697, %vm809
        %vm874 = vmor %vm698, %vm810
        %vm875 = vmor %vm699, %vm811
        %vm876 = vmor %vm700, %vm812
        %v877 = vsel %vm813, 1, 0
        %v878 = vsel %vm814, 1, 0
        %v879 = vsel %vm815, 1, 0
        %v880 = vsel %vm816, 1, 0
        %v881 = vsel %vm817, 1, 0
        %v882 = vsel %vm818, 1, 0
        %v883 = vsel %vm819, 1, 0
        %v884 = vsel %vm820, 1, 0
        %v885 = vsel %vm821, 1, 0
        %v886 = vsel %vm822, 1, 0
        %v887 = vsel %vm823, 1, 0
        %v888 = vsel %vm824, 1, 0
        %v889 = vsel %vm825, 1, 0
        %v890 = vsel %vm826, 1, 0
        %v891 = vsel %vm827, 1, 0
        %v892 = vsel %vm828, 1, 0
        %v893 = vsel %vm829, 1, 0
        %v894 = vsel %vm830, 1, 0
        %v895 = vsel %vm831, 1, 0
        %v896 = vsel %vm832, 1, 0
        %v897 = vsel %vm833, 1, 0
        %v898 = vsel %vm834, 1, 0
        %v899 = vsel %vm835, 1, 0
        %v900 = vsel %vm836, 1, 0
        %v901 = vsel %vm837, 1, 0
        %v902 = vsel %vm838, 1, 0
        %v903 = vsel %vm839, 1, 0
        %v904 = vsel %vm840, 1, 0
        %v905 = vsel %vm841, 1, 0
        %v906 = vsel %vm842, 1, 0
        %v907 = vsel %vm843, 1, 0
        %v908 = vsel %vm844, 1, 0
        %v909 = vsel %vm845, 1, 0
        %v910 = vsel %vm846, 1, 0
        %v911 = vsel %vm847, 1, 0
        %v912 = vsel %vm848, 1, 0
        %v913 = vsel %vm849, 1, 0
        %v914 = vsel %vm850, 1, 0
        %v915 = vsel %vm851, 1, 0
        %v916 = vsel %vm852, 1, 0
        %v917 = vsel %vm853, 1, 0
        %v918 = vsel %vm854, 1, 0
        %v919 = vsel %vm855, 1, 0
        %v920 = vsel %vm856, 1, 0
        %v921 = vsel %vm857, 1, 0
        %v922 = vsel %vm858, 1, 0
        %v923 = vsel %vm859, 1, 0
        %v924 = vsel %vm860, 1, 0
        %v925 = vsel %vm861, 1, 0
        %v926 = vsel %vm862, 1, 0
        %v927 = vsel %vm863, 1, 0
        %v928 = vsel %vm864, 1, 0
        %v929 = vsel %vm865, 1, 0
        %v930 = vsel %vm866, 1, 0
        %v931 = vsel %vm867, 1, 0
        %v932 = vsel %vm868, 1, 0
        %v933 = vsel %vm869, 1, 0
        %v934 = vsel %vm870, 1, 0
        %v935 = vsel %vm871, 1, 0
        %v936 = vsel %vm872, 1, 0
        %v937 = vsel %vm873, 1, 0
        %v938 = vsel %vm874, 1, 0
        %v939 = vsel %vm875, 1, 0
        %v940 = vsel %vm876, 1, 0
        %v941 = vcvt.s32.f32 %v877
        %v942 = vcvt.s32.f32 %v878
        %v943 = vcvt.s32.f32 %v879
        %v944 = vcvt.s32.f32 %v880
        %v945 = vcvt.s32.f32 %v881
        %v946 = vcvt.s32.f32 %v882
        %v947 = vcvt.s32.f32 %v883
        %v948 = vcvt.s32.f32 %v884
        %v949 = vcvt.s32.f32 %v885
        %v950 = vcvt.s32.f32 %v886
        %v951 = vcvt.s32.f32 %v887
        %v952 = vcvt.s32.f32 %v888
        %v953 = vcvt.s32.f32 %v889
        %v954 = vcvt.s32.f32 %v890
        %v955 = vcvt.s32.f32 %v891
        %v956 = vcvt.s32.f32 %v892
        %v957 = vcvt.s32.f32 %v893
        %v958 = vcvt.s32.f32 %v894
        %v959 = vcvt.s32.f32 %v895
        %v960 = vcvt.s32.f32 %v896
        %v961 = vcvt.s32.f32 %v897
        %v962 = vcvt.s32.f32 %v898
        %v963 = vcvt.s32.f32 %v899
        %v964 = vcvt.s32.f32 %v900
        %v965 = vcvt.s32.f32 %v901
        %v966 = vcvt.s32.f32 %v902
        %v967 = vcvt.s32.f32 %v903
        %v968 = vcvt.s32.f32 %v904
        %v969 = vcvt.s32.f32 %v905
        %v970 = vcvt.s32.f32 %v906
        %v971 = vcvt.s32.f32 %v907
        %v972 = vcvt.s32.f32 %v908
        %v973 = vcvt.s32.f32 %v909
        %v974 = vcvt.s32.f32 %v910
        %v975 = vcvt.s32.f32 %v911
        %v976 = vcvt.s32.f32 %v912
        %v977 = vcvt.s32.f32 %v913
        %v978 = vcvt.s32.f32 %v914
        %v979 = vcvt.s32.f32 %v915
        %v980 = vcvt.s32.f32 %v916
        %v981 = vcvt.s32.f32 %v917
        %v982 = vcvt.s32.f32 %v918
        %v983 = vcvt.s32.f32 %v919
        %v984 = vcvt.s32.f32 %v920
        %v985 = vcvt.s32.f32 %v921
        %v986 = vcvt.s32.f32 %v922
        %v987 = vcvt.s32.f32 %v923
        %v988 = vcvt.s32.f32 %v924
        %v989 = vcvt.s32.f32 %v925
        %v990 = vcvt.s32.f32 %v926
        %v991 = vcvt.s32.f32 %v927
        %v992 = vcvt.s32.f32 %v928
        %v993 = vcvt.s32.f32 %v929
        %v994 = vcvt.s32.f32 %v930
        %v995 = vcvt.s32.f32 %v931
        %v996 = vcvt.s32.f32 %v932
        %v997 = vcvt.s32.f32 %v933
        %v998 = vcvt.s32.f32 %v934
        %v999 = vcvt.s32.f32 %v935
        %v1000 = vcvt.s32.f32 %v936
        %v1001 = vcvt.s32.f32 %v937
        %v1002 = vcvt.s32.f32 %v938
        %v1003 = vcvt.s32.f32 %v939
        %v1004 = vcvt.s32.f32 %v940
        %v1005 = vld [vmem:[#allocation2] sm:$0xff]
        %v1006 = vld [vmem:[#allocation2 + $0x8] sm:$0xff]
        %v1007 = vld [vmem:[#allocation2 + $0x10] sm:$0xff]
        %v1008 = vld [vmem:[#allocation2 + $0x18] sm:$0xff]
        %v1009 = vld [vmem:[#allocation2 + $0x20] sm:$0xff]
        %v1010 = vld [vmem:[#allocation2 + $0x28] sm:$0xff]
        %v1011 = vld [vmem:[#allocation2 + $0x30] sm:$0xff]
        %v1012 = vld [vmem:[#allocation2 + $0x38] sm:$0xff]
        %v1013 = vld [vmem:[#allocation2 + $0x40] sm:$0xff]
        %v1014 = vld [vmem:[#allocation2 + $0x48] sm:$0xff]
        %v1015 = vld [vmem:[#allocation2 + $0x50] sm:$0xff]
        %v1016 = vld [vmem:[#allocation2 + $0x58] sm:$0xff]
        %v1017 = vld [vmem:[#allocation2 + $0x60] sm:$0xff]
        %v1018 = vld [vmem:[#allocation2 + $0x68] sm:$0xff]
        %v1019 = vld [vmem:[#allocation2 + $0x70] sm:$0xff]
        %v1020 = vld [vmem:[#allocation2 + $0x78] sm:$0xff]
        %v1021 = vld [vmem:[#allocation2 + $0x80] sm:$0xff]
        %v1022 = vld [vmem:[#allocation2 + $0x88] sm:$0xff]
        %v1023 = vld [vmem:[#allocation2 + $0x90] sm:$0xff]
        %v1024 = vld [vmem:[#allocation2 + $0x98] sm:$0xff]
        %v1025 = vld [vmem:[#allocation2 + $0xa0] sm:$0xff]
        %v1026 = vld [vmem:[#allocation2 + $0xa8] sm:$0xff]
        %v1027 = vld [vmem:[#allocation2 + $0xb0] sm:$0xff]
        %v1028 = vld [vmem:[#allocation2 + $0xb8] sm:$0xff]
        %v1029 = vld [vmem:[#allocation2 + $0xc0] sm:$0xff]
        %v1030 = vld [vmem:[#allocation2 + $0xc8] sm:$0xff]
        %v1031 = vld [vmem:[#allocation2 + $0xd0] sm:$0xff]
        %v1032 = vld [vmem:[#allocation2 + $0xd8] sm:$0xff]
        %v1033 = vld [vmem:[#allocation2 + $0xe0] sm:$0xff]
        %v1034 = vld [vmem:[#allocation2 + $0xe8] sm:$0xff]
        %v1035 = vld [vmem:[#allocation2 + $0xf0] sm:$0xff]
        %v1036 = vld [vmem:[#allocation2 + $0xf8] sm:$0xff]
        %v1037 = vld [vmem:[#allocation2 + $0x100] sm:$0xff]
        %v1038 = vld [vmem:[#allocation2 + $0x108] sm:$0xff]
        %v1039 = vld [vmem:[#allocation2 + $0x110] sm:$0xff]
        %v1040 = vld [vmem:[#allocation2 + $0x118] sm:$0xff]
        %v1041 = vld [vmem:[#allocation2 + $0x120] sm:$0xff]
        %v1042 = vld [vmem:[#allocation2 + $0x128] sm:$0xff]
        %v1043 = vld [vmem:[#allocation2 + $0x130] sm:$0xff]
        %v1044 = vld [vmem:[#allocation2 + $0x138] sm:$0xff]
        %v1045 = vld [vmem:[#allocation2 + $0x140] sm:$0xff]
        %v1046 = vld [vmem:[#allocation2 + $0x148] sm:$0xff]
        %v1047 = vld [vmem:[#allocation2 + $0x150] sm:$0xff]
        %v1048 = vld [vmem:[#allocation2 + $0x158] sm:$0xff]
        %v1049 = vld [vmem:[#allocation2 + $0x160] sm:$0xff]
        %v1050 = vld [vmem:[#allocation2 + $0x168] sm:$0xff]
        %v1051 = vld [vmem:[#allocation2 + $0x170] sm:$0xff]
        %v1052 = vld [vmem:[#allocation2 + $0x178] sm:$0xff]
        %v1053 = vld [vmem:[#allocation2 + $0x180] sm:$0xff]
        %v1054 = vld [vmem:[#allocation2 + $0x188] sm:$0xff]
        %v1055 = vld [vmem:[#allocation2 + $0x190] sm:$0xff]
        %v1056 = vld [vmem:[#allocation2 + $0x198] sm:$0xff]
        %v1057 = vld [vmem:[#allocation2 + $0x1a0] sm:$0xff]
        %v1058 = vld [vmem:[#allocation2 + $0x1a8] sm:$0xff]
        %v1059 = vld [vmem:[#allocation2 + $0x1b0] sm:$0xff]
        %v1060 = vld [vmem:[#allocation2 + $0x1b8] sm:$0xff]
        %v1061 = vld [vmem:[#allocation2 + $0x1c0] sm:$0xff]
        %v1062 = vld [vmem:[#allocation2 + $0x1c8] sm:$0xff]
        %v1063 = vld [vmem:[#allocation2 + $0x1d0] sm:$0xff]
        %v1064 = vld [vmem:[#allocation2 + $0x1d8] sm:$0xff]
        %v1065 = vld [vmem:[#allocation2 + $0x1e0] sm:$0xff]
        %v1066 = vld [vmem:[#allocation2 + $0x1e8] sm:$0xff]
        %v1067 = vld [vmem:[#allocation2 + $0x1f0] sm:$0xff]
        %v1068 = vld [vmem:[#allocation2 + $0x1f8] sm:$0xff]
        %1069 = vmatpush.msra.mxu0 %v1020
        %1070 = vmatpush.msra.mxu0 %v1019
        %1071 = vmatpush.msra.mxu0 %v1018
        %1072 = vmatpush.msra.mxu0 %v1017
        %1073 = vmatpush.msra.mxu0 %v1016
        %1074 = vmatpush.msra.mxu0 %v1015
        %1075 = vmatpush.msra.mxu0 %v1014
        %1076 = vmatpush.msra.mxu0 %v1013
        %1077 = vmatpush.msra.mxu0 %v1012
        %1078 = vmatpush.msra.mxu0 %v1011
        %1079 = vmatpush.msra.mxu0 %v1010
        %1080 = vmatpush.msra.mxu0 %v1009
        %1081 = vmatpush.msra.mxu0 %v1008
        %1082 = vmatpush.msra.mxu0 %v1007
        %1083 = vmatpush.msra.mxu0 %v1006
        %1084 = vmatpush.msra.mxu0 %v1005
        %1085 = vmatmul.f32.gmra.mxu0 %v941
        %v1086 = vpop.f32.mrf.mxu0
        %v1087 = vadd.f32 0.0, %v1086
        %1088 = vmatmul.f32.gmra.mxu0 %v945
        %v1089 = vpop.f32.mrf.mxu0
        %v1090 = vadd.f32 0.0, %v1089
        %1091 = vmatmul.f32.gmra.mxu0 %v949
        %v1092 = vpop.f32.mrf.mxu0
        %v1093 = vadd.f32 0.0, %v1092
        %1094 = vmatmul.f32.gmra.mxu0 %v953
        %v1095 = vpop.f32.mrf.mxu0
        %v1096 = vadd.f32 0.0, %v1095
        %1097 = vmatmul.f32.gmra.mxu0 %v957
        %v1098 = vpop.f32.mrf.mxu0
        %v1099 = vadd.f32 0.0, %v1098
        %1100 = vmatmul.f32.gmra.mxu0 %v961
        %v1101 = vpop.f32.mrf.mxu0
        %v1102 = vadd.f32 0.0, %v1101
        %1103 = vmatmul.f32.gmra.mxu0 %v965
        %v1104 = vpop.f32.mrf.mxu0
        %v1105 = vadd.f32 0.0, %v1104
        %1106 = vmatmul.f32.gmra.mxu0 %v969
        %v1107 = vpop.f32.mrf.mxu0
        %v1108 = vadd.f32 0.0, %v1107
        %1109 = vmatmul.f32.gmra.mxu0 %v973
        %v1110 = vpop.f32.mrf.mxu0
        %v1111 = vadd.f32 0.0, %v1110
        %1112 = vmatmul.f32.gmra.mxu0 %v977
        %v1113 = vpop.f32.mrf.mxu0
        %v1114 = vadd.f32 0.0, %v1113
        %1115 = vmatmul.f32.gmra.mxu0 %v981
        %v1116 = vpop.f32.mrf.mxu0
        %v1117 = vadd.f32 0.0, %v1116
        %1118 = vmatmul.f32.gmra.mxu0 %v985
        %v1119 = vpop.f32.mrf.mxu0
        %v1120 = vadd.f32 0.0, %v1119
        %1121 = vmatmul.f32.gmra.mxu0 %v989
        %v1122 = vpop.f32.mrf.mxu0
        %v1123 = vadd.f32 0.0, %v1122
        %1124 = vmatmul.f32.gmra.mxu0 %v993
        %v1125 = vpop.f32.mrf.mxu0
        %v1126 = vadd.f32 0.0, %v1125
        %1127 = vmatmul.f32.gmra.mxu0 %v997
        %v1128 = vpop.f32.mrf.mxu0
        %v1129 = vadd.f32 0.0, %v1128
        %1130 = vmatmul.f32.gmra.mxu0 %v1001
        %v1131 = vpop.f32.mrf.mxu0
        %v1132 = vadd.f32 0.0, %v1131
        %1133 = vdwg.mxu0
        %1134 = vmatpush.msra.mxu0 %v1036
        %1135 = vmatpush.msra.mxu0 %v1035
        %1136 = vmatpush.msra.mxu0 %v1034
        %1137 = vmatpush.msra.mxu0 %v1033
        %1138 = vmatpush.msra.mxu0 %v1032
        %1139 = vmatpush.msra.mxu0 %v1031
        %1140 = vmatpush.msra.mxu0 %v1030
        %1141 = vmatpush.msra.mxu0 %v1029
        %1142 = vmatpush.msra.mxu0 %v1028
        %1143 = vmatpush.msra.mxu0 %v1027
        %1144 = vmatpush.msra.mxu0 %v1026
        %1145 = vmatpush.msra.mxu0 %v1025
        %1146 = vmatpush.msra.mxu0 %v1024
        %1147 = vmatpush.msra.mxu0 %v1023
        %1148 = vmatpush.msra.mxu0 %v1022
        %1149 = vmatpush.msra.mxu0 %v1021
        %1150 = vmatmul.f32.gmra.mxu0 %v942
        %v1151 = vpop.f32.mrf.mxu0
        %v1152 = vadd.f32 %v1087, %v1151
        %1153 = vmatmul.f32.gmra.mxu0 %v946
        %v1154 = vpop.f32.mrf.mxu0
        %v1155 = vadd.f32 %v1090, %v1154
        %1156 = vmatmul.f32.gmra.mxu0 %v950
        %v1157 = vpop.f32.mrf.mxu0
        %v1158 = vadd.f32 %v1093, %v1157
        %1159 = vmatmul.f32.gmra.mxu0 %v954
        %v1160 = vpop.f32.mrf.mxu0
        %v1161 = vadd.f32 %v1096, %v1160
        %1162 = vmatmul.f32.gmra.mxu0 %v958
        %v1163 = vpop.f32.mrf.mxu0
        %v1164 = vadd.f32 %v1099, %v1163
        %1165 = vmatmul.f32.gmra.mxu0 %v962
        %v1166 = vpop.f32.mrf.mxu0
        %v1167 = vadd.f32 %v1102, %v1166
        %1168 = vmatmul.f32.gmra.mxu0 %v966
        %v1169 = vpop.f32.mrf.mxu0
        %v1170 = vadd.f32 %v1105, %v1169
        %1171 = vmatmul.f32.gmra.mxu0 %v970
        %v1172 = vpop.f32.mrf.mxu0
        %v1173 = vadd.f32 %v1108, %v1172
        %1174 = vmatmul.f32.gmra.mxu0 %v974
        %v1175 = vpop.f32.mrf.mxu0
        %v1176 = vadd.f32 %v1111, %v1175
        %1177 = vmatmul.f32.gmra.mxu0 %v978
        %v1178 = vpop.f32.mrf.mxu0
        %v1179 = vadd.f32 %v1114, %v1178
        %1180 = vmatmul.f32.gmra.mxu0 %v982
        %v1181 = vpop.f32.mrf.mxu0
        %v1182 = vadd.f32 %v1117, %v1181
        %1183 = vmatmul.f32.gmra.mxu0 %v986
        %v1184 = vpop.f32.mrf.mxu0
        %v1185 = vadd.f32 %v1120, %v1184
        %1186 = vmatmul.f32.gmra.mxu0 %v990
        %v1187 = vpop.f32.mrf.mxu0
        %v1188 = vadd.f32 %v1123, %v1187
        %1189 = vmatmul.f32.gmra.mxu0 %v994
        %v1190 = vpop.f32.mrf.mxu0
        %v1191 = vadd.f32 %v1126, %v1190
        %1192 = vmatmul.f32.gmra.mxu0 %v998
        %v1193 = vpop.f32.mrf.mxu0
        %v1194 = vadd.f32 %v1129, %v1193
        %1195 = vmatmul.f32.gmra.mxu0 %v1002
        %v1196 = vpop.f32.mrf.mxu0
        %v1197 = vadd.f32 %v1132, %v1196
        %1198 = vdwg.mxu0
        %1199 = vmatpush.msra.mxu0 %v1052
        %1200 = vmatpush.msra.mxu0 %v1051
        %1201 = vmatpush.msra.mxu0 %v1050
        %1202 = vmatpush.msra.mxu0 %v1049
        %1203 = vmatpush.msra.mxu0 %v1048
        %1204 = vmatpush.msra.mxu0 %v1047
        %1205 = vmatpush.msra.mxu0 %v1046
        %1206 = vmatpush.msra.mxu0 %v1045
        %1207 = vmatpush.msra.mxu0 %v1044
        %1208 = vmatpush.msra.mxu0 %v1043
        %1209 = vmatpush.msra.mxu0 %v1042
        %1210 = vmatpush.msra.mxu0 %v1041
        %1211 = vmatpush.msra.mxu0 %v1040
        %1212 = vmatpush.msra.mxu0 %v1039
        %1213 = vmatpush.msra.mxu0 %v1038
        %1214 = vmatpush.msra.mxu0 %v1037
        %1215 = vmatmul.f32.gmra.mxu0 %v943
        %v1216 = vpop.f32.mrf.mxu0
        %v1217 = vadd.f32 %v1152, %v1216
        %1218 = vmatmul.f32.gmra.mxu0 %v947
        %v1219 = vpop.f32.mrf.mxu0
        %v1220 = vadd.f32 %v1155, %v1219
        %1221 = vmatmul.f32.gmra.mxu0 %v951
        %v1222 = vpop.f32.mrf.mxu0
        %v1223 = vadd.f32 %v1158, %v1222
        %1224 = vmatmul.f32.gmra.mxu0 %v955
        %v1225 = vpop.f32.mrf.mxu0
        %v1226 = vadd.f32 %v1161, %v1225
        %1227 = vmatmul.f32.gmra.mxu0 %v959
        %v1228 = vpop.f32.mrf.mxu0
        %v1229 = vadd.f32 %v1164, %v1228
        %1230 = vmatmul.f32.gmra.mxu0 %v963
        %v1231 = vpop.f32.mrf.mxu0
        %v1232 = vadd.f32 %v1167, %v1231
        %1233 = vmatmul.f32.gmra.mxu0 %v967
        %v1234 = vpop.f32.mrf.mxu0
        %v1235 = vadd.f32 %v1170, %v1234
        %1236 = vmatmul.f32.gmra.mxu0 %v971
        %v1237 = vpop.f32.mrf.mxu0
        %v1238 = vadd.f32 %v1173, %v1237
        %1239 = vmatmul.f32.gmra.mxu0 %v975
        %v1240 = vpop.f32.mrf.mxu0
        %v1241 = vadd.f32 %v1176, %v1240
        %1242 = vmatmul.f32.gmra.mxu0 %v979
        %v1243 = vpop.f32.mrf.mxu0
        %v1244 = vadd.f32 %v1179, %v1243
        %1245 = vmatmul.f32.gmra.mxu0 %v983
        %v1246 = vpop.f32.mrf.mxu0
        %v1247 = vadd.f32 %v1182, %v1246
        %1248 = vmatmul.f32.gmra.mxu0 %v987
        %v1249 = vpop.f32.mrf.mxu0
        %v1250 = vadd.f32 %v1185, %v1249
        %1251 = vmatmul.f32.gmra.mxu0 %v991
        %v1252 = vpop.f32.mrf.mxu0
        %v1253 = vadd.f32 %v1188, %v1252
        %1254 = vmatmul.f32.gmra.mxu0 %v995
        %v1255 = vpop.f32.mrf.mxu0
        %v1256 = vadd.f32 %v1191, %v1255
        %1257 = vmatmul.f32.gmra.mxu0 %v999
        %v1258 = vpop.f32.mrf.mxu0
        %v1259 = vadd.f32 %v1194, %v1258
        %1260 = vmatmul.f32.gmra.mxu0 %v1003
        %v1261 = vpop.f32.mrf.mxu0
        %v1262 = vadd.f32 %v1197, %v1261
        %1263 = vdwg.mxu0
        %1264 = vmatpush.msra.mxu0 %v1068
        %1265 = vmatpush.msra.mxu0 %v1067
        %1266 = vmatpush.msra.mxu0 %v1066
        %1267 = vmatpush.msra.mxu0 %v1065
        %1268 = vmatpush.msra.mxu0 %v1064
        %1269 = vmatpush.msra.mxu0 %v1063
        %1270 = vmatpush.msra.mxu0 %v1062
        %1271 = vmatpush.msra.mxu0 %v1061
        %1272 = vmatpush.msra.mxu0 %v1060
        %1273 = vmatpush.msra.mxu0 %v1059
        %1274 = vmatpush.msra.mxu0 %v1058
        %1275 = vmatpush.msra.mxu0 %v1057
        %1276 = vmatpush.msra.mxu0 %v1056
        %1277 = vmatpush.msra.mxu0 %v1055
        %1278 = vmatpush.msra.mxu0 %v1054
        %1279 = vmatpush.msra.mxu0 %v1053
        %1280 = vmatmul.f32.gmra.mxu0 %v944
        %v1281 = vpop.f32.mrf.mxu0
        %v1282 = vadd.f32 %v1217, %v1281
        %1283 = vmatmul.f32.gmra.mxu0 %v948
        %v1284 = vpop.f32.mrf.mxu0
        %v1285 = vadd.f32 %v1220, %v1284
        %1286 = vmatmul.f32.gmra.mxu0 %v952
        %v1287 = vpop.f32.mrf.mxu0
        %v1288 = vadd.f32 %v1223, %v1287
        %1289 = vmatmul.f32.gmra.mxu0 %v956
        %v1290 = vpop.f32.mrf.mxu0
        %v1291 = vadd.f32 %v1226, %v1290
        %1292 = vmatmul.f32.gmra.mxu0 %v960
        %v1293 = vpop.f32.mrf.mxu0
        %v1294 = vadd.f32 %v1229, %v1293
        %1295 = vmatmul.f32.gmra.mxu0 %v964
        %v1296 = vpop.f32.mrf.mxu0
        %v1297 = vadd.f32 %v1232, %v1296
        %1298 = vmatmul.f32.gmra.mxu0 %v968
        %v1299 = vpop.f32.mrf.mxu0
        %v1300 = vadd.f32 %v1235, %v1299
        %1301 = vmatmul.f32.gmra.mxu0 %v972
        %v1302 = vpop.f32.mrf.mxu0
        %v1303 = vadd.f32 %v1238, %v1302
        %1304 = vmatmul.f32.gmra.mxu0 %v976
        %v1305 = vpop.f32.mrf.mxu0
        %v1306 = vadd.f32 %v1241, %v1305
        %1307 = vmatmul.f32.gmra.mxu0 %v980
        %v1308 = vpop.f32.mrf.mxu0
        %v1309 = vadd.f32 %v1244, %v1308
        %1310 = vmatmul.f32.gmra.mxu0 %v984
        %v1311 = vpop.f32.mrf.mxu0
        %v1312 = vadd.f32 %v1247, %v1311
        %1313 = vmatmul.f32.gmra.mxu0 %v988
        %v1314 = vpop.f32.mrf.mxu0
        %v1315 = vadd.f32 %v1250, %v1314
        %1316 = vmatmul.f32.gmra.mxu0 %v992
        %v1317 = vpop.f32.mrf.mxu0
        %v1318 = vadd.f32 %v1253, %v1317
        %1319 = vmatmul.f32.gmra.mxu0 %v996
        %v1320 = vpop.f32.mrf.mxu0
        %v1321 = vadd.f32 %v1256, %v1320
        %1322 = vmatmul.f32.gmra.mxu0 %v1000
        %v1323 = vpop.f32.mrf.mxu0
        %v1324 = vadd.f32 %v1259, %v1323
        %1325 = vmatmul.f32.gmra.mxu0 %v1004
        %v1326 = vpop.f32.mrf.mxu0
        %v1327 = vadd.f32 %v1262, %v1326
        %1328 = vdwg.mxu0
        %1329 = vadd.xlane.f32.xlu0 %v1282
        %v1330 = vpop.xlane.xlu0 %1329
        %1331 = vadd.xlane.f32.xlu0 %v1285
        %v1332 = vpop.xlane.xlu0 %1331
        %1333 = vadd.xlane.f32.xlu0 %v1288
        %v1334 = vpop.xlane.xlu0 %1333
        %1335 = vadd.xlane.f32.xlu0 %v1291
        %v1336 = vpop.xlane.xlu0 %1335
        %1337 = vadd.xlane.f32.xlu0 %v1294
        %v1338 = vpop.xlane.xlu0 %1337
        %1339 = vadd.xlane.f32.xlu0 %v1297
        %v1340 = vpop.xlane.xlu0 %1339
        %1341 = vadd.xlane.f32.xlu0 %v1300
        %v1342 = vpop.xlane.xlu0 %1341
        %1343 = vadd.xlane.f32.xlu0 %v1303
        %v1344 = vpop.xlane.xlu0 %1343
        %1345 = vadd.xlane.f32.xlu0 %v1306
        %v1346 = vpop.xlane.xlu0 %1345
        %1347 = vadd.xlane.f32.xlu0 %v1309
        %v1348 = vpop.xlane.xlu0 %1347
        %1349 = vadd.xlane.f32.xlu0 %v1312
        %v1350 = vpop.xlane.xlu0 %1349
        %1351 = vadd.xlane.f32.xlu0 %v1315
        %v1352 = vpop.xlane.xlu0 %1351
        %1353 = vadd.xlane.f32.xlu0 %v1318
        %v1354 = vpop.xlane.xlu0 %1353
        %1355 = vadd.xlane.f32.xlu0 %v1321
        %v1356 = vpop.xlane.xlu0 %1355
        %1357 = vadd.xlane.f32.xlu0 %v1324
        %v1358 = vpop.xlane.xlu0 %1357
        %1359 = vadd.xlane.f32.xlu0 %v1327
        %v1360 = vpop.xlane.xlu0 %1359
        %v1361 = vmul.f32 %v1330, 0.0078125
        %v1362 = vmul.f32 %v1332, 0.0078125
        %v1363 = vmul.f32 %v1334, 0.0078125
        %v1364 = vmul.f32 %v1336, 0.0078125
        %v1365 = vmul.f32 %v1338, 0.0078125
        %v1366 = vmul.f32 %v1340, 0.0078125
        %v1367 = vmul.f32 %v1342, 0.0078125
        %v1368 = vmul.f32 %v1344, 0.0078125
        %v1369 = vmul.f32 %v1346, 0.0078125
        %v1370 = vmul.f32 %v1348, 0.0078125
        %v1371 = vmul.f32 %v1350, 0.0078125
        %v1372 = vmul.f32 %v1352, 0.0078125
        %v1373 = vmul.f32 %v1354, 0.0078125
        %v1374 = vmul.f32 %v1356, 0.0078125
        %v1375 = vmul.f32 %v1358, 0.0078125
        %v1376 = vmul.f32 %v1360, 0.0078125
        %v1377 = vsub.f32 %v1282, %v1361
        %v1378 = vsub.f32 %v1285, %v1362
        %v1379 = vsub.f32 %v1288, %v1363
        %v1380 = vsub.f32 %v1291, %v1364
        %v1381 = vsub.f32 %v1294, %v1365
        %v1382 = vsub.f32 %v1297, %v1366
        %v1383 = vsub.f32 %v1300, %v1367
        %v1384 = vsub.f32 %v1303, %v1368
        %v1385 = vsub.f32 %v1306, %v1369
        %v1386 = vsub.f32 %v1309, %v1370
        %v1387 = vsub.f32 %v1312, %v1371
        %v1388 = vsub.f32 %v1315, %v1372
        %v1389 = vsub.f32 %v1318, %v1373
        %v1390 = vsub.f32 %v1321, %v1374
        %v1391 = vsub.f32 %v1324, %v1375
        %v1392 = vsub.f32 %v1327, %v1376
        %v1393 = vmul.f32 %v1377, %v1377
        %v1394 = vmul.f32 %v1378, %v1378
        %v1395 = vmul.f32 %v1379, %v1379
        %v1396 = vmul.f32 %v1380, %v1380
        %v1397 = vmul.f32 %v1381, %v1381
        %v1398 = vmul.f32 %v1382, %v1382
        %v1399 = vmul.f32 %v1383, %v1383
        %v1400 = vmul.f32 %v1384, %v1384
        %v1401 = vmul.f32 %v1385, %v1385
        %v1402 = vmul.f32 %v1386, %v1386
        %v1403 = vmul.f32 %v1387, %v1387
        %v1404 = vmul.f32 %v1388, %v1388
        %v1405 = vmul.f32 %v1389, %v1389
        %v1406 = vmul.f32 %v1390, %v1390
        %v1407 = vmul.f32 %v1391, %v1391
        %v1408 = vmul.f32 %v1392, %v1392
        %1409 = vadd.xlane.f32.xlu0 %v1393
        %v1410 = vpop.xlane.xlu0 %1409
        %1411 = vadd.xlane.f32.xlu0 %v1394
        %v1412 = vpop.xlane.xlu0 %1411
        %1413 = vadd.xlane.f32.xlu0 %v1395
        %v1414 = vpop.xlane.xlu0 %1413
        %1415 = vadd.xlane.f32.xlu0 %v1396
        %v1416 = vpop.xlane.xlu0 %1415
        %1417 = vadd.xlane.f32.xlu0 %v1397
        %v1418 = vpop.xlane.xlu0 %1417
        %1419 = vadd.xlane.f32.xlu0 %v1398
        %v1420 = vpop.xlane.xlu0 %1419
        %1421 = vadd.xlane.f32.xlu0 %v1399
        %v1422 = vpop.xlane.xlu0 %1421
        %1423 = vadd.xlane.f32.xlu0 %v1400
        %v1424 = vpop.xlane.xlu0 %1423
        %1425 = vadd.xlane.f32.xlu0 %v1401
        %v1426 = vpop.xlane.xlu0 %1425
        %1427 = vadd.xlane.f32.xlu0 %v1402
        %v1428 = vpop.xlane.xlu0 %1427
        %1429 = vadd.xlane.f32.xlu0 %v1403
        %v1430 = vpop.xlane.xlu0 %1429
        %1431 = vadd.xlane.f32.xlu0 %v1404
        %v1432 = vpop.xlane.xlu0 %1431
        %1433 = vadd.xlane.f32.xlu0 %v1405
        %v1434 = vpop.xlane.xlu0 %1433
        %1435 = vadd.xlane.f32.xlu0 %v1406
        %v1436 = vpop.xlane.xlu0 %1435
        %1437 = vadd.xlane.f32.xlu0 %v1407
        %v1438 = vpop.xlane.xlu0 %1437
        %1439 = vadd.xlane.f32.xlu0 %v1408
        %v1440 = vpop.xlane.xlu0 %1439
        %v1441 = vmul.f32 %v1410, 0.0078125
        %v1442 = vmul.f32 %v1412, 0.0078125
        %v1443 = vmul.f32 %v1414, 0.0078125
        %v1444 = vmul.f32 %v1416, 0.0078125
        %v1445 = vmul.f32 %v1418, 0.0078125
        %v1446 = vmul.f32 %v1420, 0.0078125
        %v1447 = vmul.f32 %v1422, 0.0078125
        %v1448 = vmul.f32 %v1424, 0.0078125
        %v1449 = vmul.f32 %v1426, 0.0078125
        %v1450 = vmul.f32 %v1428, 0.0078125
        %v1451 = vmul.f32 %v1430, 0.0078125
        %v1452 = vmul.f32 %v1432, 0.0078125
        %v1453 = vmul.f32 %v1434, 0.0078125
        %v1454 = vmul.f32 %v1436, 0.0078125
        %v1455 = vmul.f32 %v1438, 0.0078125
        %v1456 = vmul.f32 %v1440, 0.0078125
        %v1457 = vld [vmem:[%s2] sm:$0x1]
        %v1458 = vadd.f32 %v1441, 1e-12
        %v1459 = vadd.f32 %v1442, 1e-12
        %v1460 = vadd.f32 %v1443, 1e-12
        %v1461 = vadd.f32 %v1444, 1e-12
        %v1462 = vadd.f32 %v1445, 1e-12
        %v1463 = vadd.f32 %v1446, 1e-12
        %v1464 = vadd.f32 %v1447, 1e-12
        %v1465 = vadd.f32 %v1448, 1e-12
        %v1466 = vadd.f32 %v1449, 1e-12
        %v1467 = vadd.f32 %v1450, 1e-12
        %v1468 = vadd.f32 %v1451, 1e-12
        %v1469 = vadd.f32 %v1452, 1e-12
        %v1470 = vadd.f32 %v1453, 1e-12
        %v1471 = vadd.f32 %v1454, 1e-12
        %v1472 = vadd.f32 %v1455, 1e-12
        %v1473 = vadd.f32 %v1456, 1e-12
        %v1474 = vrsqrt.pop %v1458
        %v1475 = vmul.f32 %v1474, %v1458
        %v1476 = vmul.f32 %v1475, %v1474
        %v1477 = vmul.f32 0.5, %v1476
        %v1478 = vsub.f32 1.5, %v1477
        %v1479 = vmul.f32 %v1474, %v1478
        %vm1480 = vweird.f32 %v1458
        %vm1481 = vweird.f32 %v1474
        %vm1482 = vmor %vm1480, %vm1481
        %v1483 = vsel %vm1482, %v1474, %v1479
        %v1484 = vrsqrt.pop %v1459
        %v1485 = vmul.f32 %v1484, %v1459
        %v1486 = vmul.f32 %v1485, %v1484
        %v1487 = vmul.f32 0.5, %v1486
        %v1488 = vsub.f32 1.5, %v1487
        %v1489 = vmul.f32 %v1484, %v1488
        %vm1490 = vweird.f32 %v1459
        %vm1491 = vweird.f32 %v1484
        %vm1492 = vmor %vm1490, %vm1491
        %v1493 = vsel %vm1492, %v1484, %v1489
        %v1494 = vrsqrt.pop %v1460
        %v1495 = vmul.f32 %v1494, %v1460
        %v1496 = vmul.f32 %v1495, %v1494
        %v1497 = vmul.f32 0.5, %v1496
        %v1498 = vsub.f32 1.5, %v1497
        %v1499 = vmul.f32 %v1494, %v1498
        %vm1500 = vweird.f32 %v1460
        %vm1501 = vweird.f32 %v1494
        %vm1502 = vmor %vm1500, %vm1501
        %v1503 = vsel %vm1502, %v1494, %v1499
        %v1504 = vrsqrt.pop %v1461
        %v1505 = vmul.f32 %v1504, %v1461
        %v1506 = vmul.f32 %v1505, %v1504
        %v1507 = vmul.f32 0.5, %v1506
        %v1508 = vsub.f32 1.5, %v1507
        %v1509 = vmul.f32 %v1504, %v1508
        %vm1510 = vweird.f32 %v1461
        %vm1511 = vweird.f32 %v1504
        %vm1512 = vmor %vm1510, %vm1511
        %v1513 = vsel %vm1512, %v1504, %v1509
        %v1514 = vrsqrt.pop %v1462
        %v1515 = vmul.f32 %v1514, %v1462
        %v1516 = vmul.f32 %v1515, %v1514
        %v1517 = vmul.f32 0.5, %v1516
        %v1518 = vsub.f32 1.5, %v1517
        %v1519 = vmul.f32 %v1514, %v1518
        %vm1520 = vweird.f32 %v1462
        %vm1521 = vweird.f32 %v1514
        %vm1522 = vmor %vm1520, %vm1521
        %v1523 = vsel %vm1522, %v1514, %v1519
        %v1524 = vrsqrt.pop %v1463
        %v1525 = vmul.f32 %v1524, %v1463
        %v1526 = vmul.f32 %v1525, %v1524
        %v1527 = vmul.f32 0.5, %v1526
        %v1528 = vsub.f32 1.5, %v1527
        %v1529 = vmul.f32 %v1524, %v1528
        %vm1530 = vweird.f32 %v1463
        %vm1531 = vweird.f32 %v1524
        %vm1532 = vmor %vm1530, %vm1531
        %v1533 = vsel %vm1532, %v1524, %v1529
        %v1534 = vrsqrt.pop %v1464
        %v1535 = vmul.f32 %v1534, %v1464
        %v1536 = vmul.f32 %v1535, %v1534
        %v1537 = vmul.f32 0.5, %v1536
        %v1538 = vsub.f32 1.5, %v1537
        %v1539 = vmul.f32 %v1534, %v1538
        %vm1540 = vweird.f32 %v1464
        %vm1541 = vweird.f32 %v1534
        %vm1542 = vmor %vm1540, %vm1541
        %v1543 = vsel %vm1542, %v1534, %v1539
        %v1544 = vrsqrt.pop %v1465
        %v1545 = vmul.f32 %v1544, %v1465
        %v1546 = vmul.f32 %v1545, %v1544
        %v1547 = vmul.f32 0.5, %v1546
        %v1548 = vsub.f32 1.5, %v1547
        %v1549 = vmul.f32 %v1544, %v1548
        %vm1550 = vweird.f32 %v1465
        %vm1551 = vweird.f32 %v1544
        %vm1552 = vmor %vm1550, %vm1551
        %v1553 = vsel %vm1552, %v1544, %v1549
        %v1554 = vrsqrt.pop %v1466
        %v1555 = vmul.f32 %v1554, %v1466
        %v1556 = vmul.f32 %v1555, %v1554
        %v1557 = vmul.f32 0.5, %v1556
        %v1558 = vsub.f32 1.5, %v1557
        %v1559 = vmul.f32 %v1554, %v1558
        %vm1560 = vweird.f32 %v1466
        %vm1561 = vweird.f32 %v1554
        %vm1562 = vmor %vm1560, %vm1561
        %v1563 = vsel %vm1562, %v1554, %v1559
        %v1564 = vrsqrt.pop %v1467
        %v1565 = vmul.f32 %v1564, %v1467
        %v1566 = vmul.f32 %v1565, %v1564
        %v1567 = vmul.f32 0.5, %v1566
        %v1568 = vsub.f32 1.5, %v1567
        %v1569 = vmul.f32 %v1564, %v1568
        %vm1570 = vweird.f32 %v1467
        %vm1571 = vweird.f32 %v1564
        %vm1572 = vmor %vm1570, %vm1571
        %v1573 = vsel %vm1572, %v1564, %v1569
        %v1574 = vrsqrt.pop %v1468
        %v1575 = vmul.f32 %v1574, %v1468
        %v1576 = vmul.f32 %v1575, %v1574
        %v1577 = vmul.f32 0.5, %v1576
        %v1578 = vsub.f32 1.5, %v1577
        %v1579 = vmul.f32 %v1574, %v1578
        %vm1580 = vweird.f32 %v1468
        %vm1581 = vweird.f32 %v1574
        %vm1582 = vmor %vm1580, %vm1581
        %v1583 = vsel %vm1582, %v1574, %v1579
        %v1584 = vrsqrt.pop %v1469
        %v1585 = vmul.f32 %v1584, %v1469
        %v1586 = vmul.f32 %v1585, %v1584
        %v1587 = vmul.f32 0.5, %v1586
        %v1588 = vsub.f32 1.5, %v1587
        %v1589 = vmul.f32 %v1584, %v1588
        %vm1590 = vweird.f32 %v1469
        %vm1591 = vweird.f32 %v1584
        %vm1592 = vmor %vm1590, %vm1591
        %v1593 = vsel %vm1592, %v1584, %v1589
        %v1594 = vrsqrt.pop %v1470
        %v1595 = vmul.f32 %v1594, %v1470
        %v1596 = vmul.f32 %v1595, %v1594
        %v1597 = vmul.f32 0.5, %v1596
        %v1598 = vsub.f32 1.5, %v1597
        %v1599 = vmul.f32 %v1594, %v1598
        %vm1600 = vweird.f32 %v1470
        %vm1601 = vweird.f32 %v1594
        %vm1602 = vmor %vm1600, %vm1601
        %v1603 = vsel %vm1602, %v1594, %v1599
        %v1604 = vrsqrt.pop %v1471
        %v1605 = vmul.f32 %v1604, %v1471
        %v1606 = vmul.f32 %v1605, %v1604
        %v1607 = vmul.f32 0.5, %v1606
        %v1608 = vsub.f32 1.5, %v1607
        %v1609 = vmul.f32 %v1604, %v1608
        %vm1610 = vweird.f32 %v1471
        %vm1611 = vweird.f32 %v1604
        %vm1612 = vmor %vm1610, %vm1611
        %v1613 = vsel %vm1612, %v1604, %v1609
        %v1614 = vrsqrt.pop %v1472
        %v1615 = vmul.f32 %v1614, %v1472
        %v1616 = vmul.f32 %v1615, %v1614
        %v1617 = vmul.f32 0.5, %v1616
        %v1618 = vsub.f32 1.5, %v1617
        %v1619 = vmul.f32 %v1614, %v1618
        %vm1620 = vweird.f32 %v1472
        %vm1621 = vweird.f32 %v1614
        %vm1622 = vmor %vm1620, %vm1621
        %v1623 = vsel %vm1622, %v1614, %v1619
        %v1624 = vrsqrt.pop %v1473
        %v1625 = vmul.f32 %v1624, %v1473
        %v1626 = vmul.f32 %v1625, %v1624
        %v1627 = vmul.f32 0.5, %v1626
        %v1628 = vsub.f32 1.5, %v1627
        %v1629 = vmul.f32 %v1624, %v1628
        %vm1630 = vweird.f32 %v1473
        %vm1631 = vweird.f32 %v1624
        %vm1632 = vmor %vm1630, %vm1631
        %v1633 = vsel %vm1632, %v1624, %v1629
        %v1635 = vperm.slane %v1457, 0
        %v1637 = vmul.f32 %v1635, %v1483
        %v1638 = vmul.f32 %v1635, %v1493
        %v1639 = vmul.f32 %v1635, %v1503
        %v1640 = vmul.f32 %v1635, %v1513
        %v1641 = vmul.f32 %v1635, %v1523
        %v1642 = vmul.f32 %v1635, %v1533
        %v1643 = vmul.f32 %v1635, %v1543
        %v1644 = vmul.f32 %v1635, %v1553
        %v1645 = vmul.f32 %v1635, %v1563
        %v1646 = vmul.f32 %v1635, %v1573
        %v1647 = vmul.f32 %v1635, %v1583
        %v1648 = vmul.f32 %v1635, %v1593
        %v1649 = vmul.f32 %v1635, %v1603
        %v1650 = vmul.f32 %v1635, %v1613
        %v1651 = vmul.f32 %v1635, %v1623
        %v1652 = vmul.f32 %v1635, %v1633
        %v1653 = vmul.f32 %v1377, %v1637
        %v1654 = vmul.f32 %v1378, %v1638
        %v1655 = vmul.f32 %v1379, %v1639
        %v1656 = vmul.f32 %v1380, %v1640
        %v1657 = vmul.f32 %v1381, %v1641
        %v1658 = vmul.f32 %v1382, %v1642
        %v1659 = vmul.f32 %v1383, %v1643
        %v1660 = vmul.f32 %v1384, %v1644
        %v1661 = vmul.f32 %v1385, %v1645
        %v1662 = vmul.f32 %v1386, %v1646
        %v1663 = vmul.f32 %v1387, %v1647
        %v1664 = vmul.f32 %v1388, %v1648
        %v1665 = vmul.f32 %v1389, %v1649
        %v1666 = vmul.f32 %v1390, %v1650
        %v1667 = vmul.f32 %v1391, %v1651
        %v1668 = vmul.f32 %v1392, %v1652
        %v1669 = vld [vmem:[%s3] sm:$0x1]
        %v1671 = vperm.slane %v1669, 0
        %v1673 = vadd.f32 %v1653, %v1671
        %v1674 = vadd.f32 %v1654, %v1671
        %v1675 = vadd.f32 %v1655, %v1671
        %v1676 = vadd.f32 %v1656, %v1671
        %v1677 = vadd.f32 %v1657, %v1671
        %v1678 = vadd.f32 %v1658, %v1671
        %v1679 = vadd.f32 %v1659, %v1671
        %v1680 = vadd.f32 %v1660, %v1671
        %v1681 = vadd.f32 %v1661, %v1671
        %v1682 = vadd.f32 %v1662, %v1671
        %v1683 = vadd.f32 %v1663, %v1671
        %v1684 = vadd.f32 %v1664, %v1671
        %v1685 = vadd.f32 %v1665, %v1671
        %v1686 = vadd.f32 %v1666, %v1671
        %v1687 = vadd.f32 %v1667, %v1671
        %v1688 = vadd.f32 %v1668, %v1671
        %1689 = vst [vmem:[%s208] sm:$0xff] %v1673
        %1690 = vst [vmem:[%s208 + $0x8] sm:$0xff] %v1674
        %1691 = vst [vmem:[%s208 + $0x10] sm:$0xff] %v1675
        %1692 = vst [vmem:[%s208 + $0x18] sm:$0xff] %v1676
        %1693 = vst [vmem:[%s208 + $0x20] sm:$0xff] %v1677
        %1694 = vst [vmem:[%s208 + $0x28] sm:$0xff] %v1678
        %1695 = vst [vmem:[%s208 + $0x30] sm:$0xff] %v1679
        %1696 = vst [vmem:[%s208 + $0x38] sm:$0xff] %v1680
        %1697 = vst [vmem:[%s208 + $0x40] sm:$0xff] %v1681
        %1698 = vst [vmem:[%s208 + $0x48] sm:$0xff] %v1682
        %1699 = vst [vmem:[%s208 + $0x50] sm:$0xff] %v1683
        %1700 = vst [vmem:[%s208 + $0x58] sm:$0xff] %v1684
        %1701 = vst [vmem:[%s208 + $0x60] sm:$0xff] %v1685
        %1702 = vst [vmem:[%s208 + $0x68] sm:$0xff] %v1686
        %1703 = vst [vmem:[%s208 + $0x70] sm:$0xff] %v1687
        %1704 = vst [vmem:[%s208 + $0x78] sm:$0xff] %v1688
        %s1705 = sand.u32 %s116, 1
        %s1706 = scalar_lea.sflag [#allocation4], %s1705
        %s1707 = sand.u32 %s116, 1
        %s1708 = smul.addr %s1707, 128
        %s1709 = scalar_lea.vmem [#allocation5], %s1708
        // Predicated region
        $region41: #{tpu_custom_call.1} parent=35 // pred_check
          %p1710 = pneg %p126
        $region42: #{tpu_custom_call.1} parent=35 // pred_check_branch
          %1712 = sbr.rel (%p1710) target = $region44
        $region43: #{tpu_custom_call.1} parent=35 // pred_region
          %s1713 = smul.u32 16, %s19
          %1715 = vsyncadd %s1706, 0
          %s1716 = smul.addr %s1713, 8
          %s1717 = scalar_lea.hbm %s4, %s1716
          %s1718 = sshll.u32 %s1709, 4
          %s1719 = int_to_ptr.vmem [resolvable:$true] %s1718
          %s1720 = sshll.u32 %s1717, 4
          %s1721 = int_to_ptr.hbm [resolvable:$true] %s1720
          %1726 = dma.vmem_to_hbm [thread:$0]  %s1719, 2048, %s1721, %s1706, 128, 128, 8
        $region44: #{tpu_custom_call.1} parent=35 // pred_fallthru
          _
      $region36: #{tpu_custom_call.1} parent=5 // pred_fallthru
        _
      %p1727 = scmp.le.s32.totalorder 2, %s14
      // Predicated region
      $region45: #{tpu_custom_call.1} parent=5 // pred_check
        %p1728 = pneg %p1727
      $region46: #{tpu_custom_call.1} parent=5 // pred_check_branch
        %1730 = sbr.rel (%p1728) target = $region48
      $region47: #{tpu_custom_call.1} parent=5 // pred_region
        %s1731 = ssub.s32 %s14, 2
        // Predicated region
        $region49: #{tpu_custom_call.1} parent=47 // pred_check
          %p1732 = pneg %p132
        $region50: #{tpu_custom_call.1} parent=47 // pred_check_branch
          %1734 = sbr.rel (%p1732) target = $region52
        $region51: #{tpu_custom_call.1} parent=47 // pred_region
          %s1735 = sand.u32 %s117, 1
          %s1736 = scalar_lea.sflag [#allocation4], %s1735
          %s1737 = sand.u32 %s117, 1
          %s1738 = smul.addr %s1737, 128
          %s1739 = scalar_lea.vmem [#allocation5], %s1738
          %1741 = dma.done %s1736, 2048
        $region52: #{tpu_custom_call.1} parent=47 // pred_fallthru
          _
      $region48: #{tpu_custom_call.1} parent=5 // pred_fallthru
        _
    $region6: #{tpu_custom_call.1} parent=1 // loop_footer
      %s18 = sadd.s32 1, %s14
    $region7: #{tpu_custom_call.1} parent=1 // loop_footer_branch
      %13 = sbr.rel target = $region3
    $region8: #{tpu_custom_call.1} parent=1 // loop_exit
      _
    %1742 = vsyncpa [#allocation3], 1
    %s1743 = scalar_lea.sflag [#allocation3], 1
    %1744 = vsyncpa %s1743, 1
    %1745 = vsyncpa [#allocation4], 1
    %s1746 = scalar_lea.sflag [#allocation4], 1
    %1747 = vsyncpa %s1746, 1

</llo_original>
